<compile_context>
chip_gen: v7x
topology: tpu7x:2x2x1
jax: 0.10.0
libtpu: 0.0.40
codegen_flags: <defaults>
</compile_context>

<pallas_src>
import functools

import jax
import jax.numpy as jnp
from jax.experimental import pallas as pl
from jax.experimental.pallas import tpu as pltpu

_LANE = 128          # vreg lane width
_MAX_TILE_R = 512    # 512 x 128 x 4B = 256 KiB per input per buffer
_KERNEL_MIN_N = 1024 # below this, plain JAX is faster than a kernel launch


def _round_up(x, m):
    return ((x + m - 1) // m) * m


def _make_kernel(n, tile_r, needs_mask):
    inv_n = 1.0 / float(n)

    def kernel(minmax_ref, in_ref, tgt_ref, out_ref, acc_ref):
        # minmax_ref: SMEM (2,)            -> [min_num, max_num]
        # in_ref:     VMEM (tile_r, 128)   -> flattened inputs tile
        # tgt_ref:    VMEM (tile_r, 128)   -> raw targets tile
        # out_ref:    SMEM (1, 1)          -> scalar loss
        # acc_ref:    VMEM (tile_r, 128)   -> running sum of squared diffs
        i = pl.program_id(0)

        @pl.when(i == 0)
        def _():
            acc_ref[...] = jnp.zeros_like(acc_ref)

        min_num = minmax_ref[0]
        rng = minmax_ref[1] - minmax_ref[0]

        # Cast in-register (keeps HBM traffic at the input dtype width).
        x = in_ref[...].astype(jnp.float32)
        t = tgt_ref[...].astype(jnp.float32)

        # Folded normalization: no per-element divide in the hot loop.
        d = jnp.log1p(t) - (min_num + rng * x)
        sq = d * d

        if needs_mask:
            rows = jax.lax.broadcasted_iota(jnp.int32, (tile_r, _LANE), 0)
            lanes = jax.lax.broadcasted_iota(jnp.int32, (tile_r, _LANE), 1)
            idx = i * (tile_r * _LANE) + rows * _LANE + lanes
            sq = jnp.where(idx < n, sq, 0.0)

        acc_ref[...] += sq  # pure VPU accumulate; no per-step reduction

        @pl.when(i == pl.num_programs(0) - 1)
        def _():
            inv_rng = 1.0 / rng                      # one scalar divide, once
            total = jnp.sum(acc_ref[...])            # single XLU reduction
            out_ref[0, 0] = total * inv_rng * inv_rng * inv_n

    return kernel


def logmse_loss(inputs, targets, max_num, min_num):
    """Pallas implementation of LogMSELoss.forward."""
    n = targets.shape[0]
    x = jnp.reshape(inputs, (n,))   # mirrors `inputs.reshape(len(targets))`
    t = jnp.reshape(targets, (n,))

    if n < _KERNEL_MIN_N:
        # Tiny problem: kernel-launch overhead dwarfs the work.
        tt = (jnp.log1p(t.astype(jnp.float32)) - min_num) / (max_num - min_num)
        return jnp.mean((tt - x.astype(jnp.float32)) ** 2)

    # Lane-dense layout: (R, 128), R a multiple of the tile height.
    r = pl.cdiv(n, _LANE)
    tile_r = min(_MAX_TILE_R, _round_up(r, 8))
    r_pad = _round_up(r, tile_r)
    num_tiles = r_pad // tile_r
    pad = r_pad * _LANE - n
    needs_mask = pad > 0

    # Keep the incoming dtype; cast happens inside the kernel after load.
    x_p = jnp.pad(x, (0, pad)).reshape(r_pad, _LANE)
    t_p = jnp.pad(t, (0, pad)).reshape(r_pad, _LANE)

    scalars = jnp.stack(
        [jnp.asarray(min_num, jnp.float32), jnp.asarray(max_num, jnp.float32)]
    )

    out = pl.pallas_call(
        _make_kernel(n, tile_r, needs_mask),
        out_shape=jax.ShapeDtypeStruct((1, 1), jnp.float32),
        grid=(num_tiles,),
        in_specs=[
            pl.BlockSpec(memory_space=pltpu.SMEM),               # [min, max]
            pl.BlockSpec((tile_r, _LANE), lambda i: (i, 0)),     # inputs tile
            pl.BlockSpec((tile_r, _LANE), lambda i: (i, 0)),     # targets tile
        ],
        out_specs=pl.BlockSpec(memory_space=pltpu.SMEM),
        scratch_shapes=[pltpu.VMEM((tile_r, _LANE), jnp.float32)],
        compiler_params=pltpu.CompilerParams(
            dimension_semantics=("arbitrary",),   # streaming reduction axis
            vmem_limit_bytes=32 * 1024 * 1024,    # v7x-safe budget
        ),
    )(scalars, x_p, t_p)
    return out[0, 0]


def _reference(inputs, targets, max_num, min_num):
    n = targets.shape[0]
    t = (jnp.log(targets.astype(jnp.float32) + 1.0) - min_num) / (max_num - min_num)
    x = jnp.reshape(inputs, (n,)).astype(jnp.float32)
    return jnp.mean((t - x) ** 2)


if __name__ == "__main__":
    key = jax.random.PRNGKey(0)
    k1, k2, k3, k4 = jax.random.split(key, 4)

    max_num = 3.0   # e.g. log(max_target + 1)
    min_num = 0.0   # e.g. log(min_target + 1)

    # Case 1: tiny batch (as in the original module's typical use) -> JAX path.
    n_small = 8
    inp_s = jax.random.uniform(k1, (n_small, 1), dtype=jnp.float32)
    tgt_s = jax.random.uniform(k2, (n_small,), dtype=jnp.float32,
                               minval=0.0, maxval=10.0)
    loss_s = logmse_loss(inp_s, tgt_s, max_num, min_num)
    jax.block_until_ready(loss_s)
    ref_s = _reference(inp_s, tgt_s, max_num, min_num)
    assert jnp.allclose(loss_s, ref_s, rtol=1e-5, atol=1e-6), (loss_s, ref_s)

    # Case 2: larger batch -> Pallas kernel path (multi-tile + ragged tail).
    n_big = 70_000   # 547 rows of 128 -> 2 grid tiles of 512 rows, masked tail
    inp_b = jax.random.uniform(k3, (n_big, 1), dtype=jnp.float32)
    tgt_b = jax.random.uniform(k4, (n_big,), dtype=jnp.float32,
                               minval=0.0, maxval=10.0)
    loss_b = logmse_loss(inp_b, tgt_b, max_num, min_num)
    jax.block_until_ready(loss_b)
    ref_b = _reference(inp_b, tgt_b, max_num, min_num)
    assert jnp.allclose(loss_b, ref_b, rtol=1e-4, atol=1e-6), (loss_b, ref_b)

    print("KERNEL_OK")
</pallas_src>

<mosaic_0001>
module attributes {stable_mosaic.version = 11 : i64} {
  func.func @kernel(%arg0: i32, %arg1: memref<2xf32, #tpu.memory_space<smem>>, %arg2: memref<512x128xf32, #tpu.memory_space<vmem>>, %arg3: memref<512x128xf32, #tpu.memory_space<vmem>>, %arg4: memref<1x1xf32, #tpu.memory_space<smem>>, %arg5: memref<512x128xf32, #tpu.memory_space<vmem>>) attributes {dimension_semantics = [#tpu.dimension_semantics<arbitrary>], iteration_bounds = array<i64: 2>, scalar_prefetch = 0 : i64, scratch_operands = 1 : i64, tpu.core_type = #tpu.core_type<tc>, window_params = [{transform_indices = @transform_0, window_bounds = array<i64: 2>}, {transform_indices = @transform_1, window_bounds = array<i64: 512, 128>}, {transform_indices = @transform_2, window_bounds = array<i64: 512, 128>}, {transform_indices = @transform_3, window_bounds = array<i64: 1, 1>}]} {
    %c0_i32 = arith.constant 0 : i32
    %0 = arith.cmpi eq, %arg0, %c0_i32 : i32
    %1 = arith.extui %0 : i1 to i32
    %c0_i32_0 = arith.constant 0 : i32
    %2 = arith.cmpi ne, %1, %c0_i32_0 : i32
    scf.if %2 {
      %cst_11 = arith.constant 0.000000e+00 : f32
      %34 = vector.broadcast %cst_11 : f32 to vector<512x128xf32>
      %c0_12 = arith.constant 0 : index
      %c0_13 = arith.constant 0 : index
      %35 = vector.load %arg5[%c0_12, %c0_13] : memref<512x128xf32, #tpu.memory_space<vmem>>, vector<512x128xf32>
      tpu.vector_store %arg5[%c0_12, %c0_13], %34 {strides = array<i32>} : memref<512x128xf32, #tpu.memory_space<vmem>>, vector<512x128xf32>,
    } else {
    }
    %c0 = arith.constant 0 : index
    %3 = memref.load %arg1[%c0] : memref<2xf32, #tpu.memory_space<smem>>
    %c1 = arith.constant 1 : index
    %4 = memref.load %arg1[%c1] : memref<2xf32, #tpu.memory_space<smem>>
    %c0_1 = arith.constant 0 : index
    %5 = memref.load %arg1[%c0_1] : memref<2xf32, #tpu.memory_space<smem>>
    %6 = arith.subf %4, %5 : f32
    %c0_2 = arith.constant 0 : index
    %c0_3 = arith.constant 0 : index
    %7 = vector.load %arg2[%c0_2, %c0_3] : memref<512x128xf32, #tpu.memory_space<vmem>>, vector<512x128xf32>
    %c0_4 = arith.constant 0 : index
    %c0_5 = arith.constant 0 : index
    %8 = vector.load %arg3[%c0_4, %c0_5] : memref<512x128xf32, #tpu.memory_space<vmem>>, vector<512x128xf32>
    %9 = math.log1p %8 : vector<512x128xf32>
    %10 = vector.broadcast %6 : f32 to vector<512x128xf32>
    %11 = arith.mulf %10, %7 : vector<512x128xf32>
    %12 = vector.broadcast %3 : f32 to vector<512x128xf32>
    %13 = arith.addf %12, %11 : vector<512x128xf32>
    %14 = arith.subf %9, %13 : vector<512x128xf32>
    %15 = arith.mulf %14, %14 : vector<512x128xf32>
    %16 = tpu.iota {dimensions = array<i32: 0>} : vector<512x128xi32>
    %17 = tpu.iota {dimensions = array<i32: 1>} : vector<512x128xi32>
    %c65536_i32 = arith.constant 65536 : i32
    %18 = arith.muli %arg0, %c65536_i32 : i32
    %c128_i32 = arith.constant 128 : i32
    %19 = vector.broadcast %c128_i32 : i32 to vector<512x128xi32>
    %20 = arith.muli %16, %19 : vector<512x128xi32>
    %21 = vector.broadcast %18 : i32 to vector<512x128xi32>
    %22 = arith.addi %21, %20 : vector<512x128xi32>
    %23 = arith.addi %22, %17 : vector<512x128xi32>
    %c70000_i32 = arith.constant 70000 : i32
    %24 = vector.broadcast %c70000_i32 : i32 to vector<512x128xi32>
    %25 = arith.cmpi slt, %23, %24 : vector<512x128xi32>
    %cst = arith.constant 0.000000e+00 : f32
    %26 = vector.broadcast %cst : f32 to vector<512x128xf32>
    %27 = arith.select %25, %15, %26 : vector<512x128xi1>, vector<512x128xf32>
    %c0_6 = arith.constant 0 : index
    %c0_7 = arith.constant 0 : index
    %28 = vector.load %arg5[%c0_6, %c0_7] : memref<512x128xf32, #tpu.memory_space<vmem>>, vector<512x128xf32>
    %29 = arith.addf %28, %27 : vector<512x128xf32>
    %c0_8 = arith.constant 0 : index
    %c0_9 = arith.constant 0 : index
    %30 = vector.load %arg5[%c0_8, %c0_9] : memref<512x128xf32, #tpu.memory_space<vmem>>, vector<512x128xf32>
    tpu.vector_store %arg5[%c0_8, %c0_9], %29 {strides = array<i32>} : memref<512x128xf32, #tpu.memory_space<vmem>>, vector<512x128xf32>,
    %c1_i32 = arith.constant 1 : i32
    %31 = arith.cmpi eq, %arg0, %c1_i32 : i32
    %32 = arith.extui %31 : i1 to i32
    %c0_i32_10 = arith.constant 0 : i32
    %33 = arith.cmpi ne, %32, %c0_i32_10 : i32
    scf.if %33 {
      %cst_11 = arith.constant 1.000000e+00 : f32
      %34 = arith.divf %cst_11, %6 : f32
      %c0_12 = arith.constant 0 : index
      %c0_13 = arith.constant 0 : index
      %35 = vector.load %arg5[%c0_12, %c0_13] : memref<512x128xf32, #tpu.memory_space<vmem>>, vector<512x128xf32>
      %36 = vector.shape_cast %35 : vector<512x128xf32> to vector<1x512x128xf32>
      %cst_14 = arith.constant dense<0.000000e+00> : vector<1xf32>
      %37 = vector.multi_reduction <add>, %36, %cst_14 [1, 2] : vector<1x512x128xf32> to vector<1xf32>
      %38 = vector.shape_cast %37 : vector<1xf32> to vector<1x1x1xf32>
      %39 = vector.extract %38[0, 0, 0] : f32 from vector<1x1x1xf32>
      %40 = arith.mulf %39, %34 : f32
      %41 = arith.mulf %40, %34 : f32
      %cst_15 = arith.constant 1.42857143E-5 : f32
      %42 = arith.mulf %41, %cst_15 : f32
      %c0_16 = arith.constant 0 : index
      %c0_17 = arith.constant 0 : index
      %43 = memref.load %arg4[%c0_16, %c0_17] : memref<1x1xf32, #tpu.memory_space<smem>>
      memref.store %42, %arg4[%c0_16, %c0_17] : memref<1x1xf32, #tpu.memory_space<smem>>
    } else {
    }
    return
  }
  func.func @transform_0(%arg0: i32) -> i32 {
    %c0_i32 = arith.constant 0 : i32
    %c0_i32_0 = arith.constant 0 : i32
    return %c0_i32 : i32
  }
  func.func @transform_1(%arg0: i32) -> (i32, i32) {
    %c0_i32 = arith.constant 0 : i32
    %c0_i32_0 = arith.constant 0 : i32
    return %arg0, %c0_i32 : i32, i32
  }
  func.func @transform_2(%arg0: i32) -> (i32, i32) {
    %c0_i32 = arith.constant 0 : i32
    %c0_i32_0 = arith.constant 0 : i32
    return %arg0, %c0_i32 : i32, i32
  }
  func.func @transform_3(%arg0: i32) -> (i32, i32) {
    %c0_i32 = arith.constant 0 : i32
    %c0_i32_0 = arith.constant 0 : i32
    %c0_i32_1 = arith.constant 0 : i32
    return %c0_i32, %c0_i32_0 : i32, i32
  }
}

</mosaic_0001>

<llo_original>
// kernel: tpu_custom_call.1
$region0: #{tpu_custom_call.1}
  #allocation0 [shape = 'u32[]', space=smem, size = 0x4, offset = 0x4, fixed_abs, tag = 'smem constant byte address 0x4 - core index']
  #allocation1 [shape = 'u32[144,128]{1,0:T(1,128)}', space=vmem, size = 0x12000, scoped, tag = 'internal scratch']
  #allocation2 [shape = 'f32[512,128]{1,0:T(8,128)}', space=vmem, size = 0x40000, scoped, tag = 'scratch operand']
  %s0 = inlined_call_operand.hbm [shape: f32[2], index: 0, kind: input, shape index: {}]
  %s1 = inlined_call_operand.hbm [shape: f32[1024,128], index: 1, kind: input, shape index: {}]
  %s2 = inlined_call_operand.hbm [shape: f32[1024,128], index: 2, kind: input, shape index: {}]
  %s3 = inlined_call_operand.hbm [shape: f32[1,1], index: 3, kind: output, shape index: {}]
  %s4 = sld [smem:[#allocation0]]
  $region65: #{tpu_custom_call.1} parent=0
    _
  %s6 = ssub.s32 1, %s4
  %s7 = scalar_select 0, %s6, %s4
  $region1: #{tpu_custom_call.1} parent=0
    #allocation3 [shape = 'u8[512]{0}', space=smem, size = 0x200, scoped, tag = 'input window, operand 0, single buffered']
    #allocation4 [shape = 's32[2]{0}', space=sflag, size = 0x8, scoped, tag = 'scoped memory for tpu_custom_call.1']
    #allocation5 [shape = 's32[2]{0}', space=sflag, size = 0x8, scoped, tag = 'scoped memory for tpu_custom_call.1']
    #allocation6 [shape = 's32[2]{0}', space=sflag, size = 0x8, scoped, tag = 'scoped memory for tpu_custom_call.1']
    #allocation7 [shape = 'u8[524288]{0}', space=vmem, size = 0x80000, scoped, tag = 'input window, operand 1']
    #allocation8 [shape = 'u8[524288]{0}', space=vmem, size = 0x80000, scoped, tag = 'input window, operand 2']
    #allocation9 [shape = 's32[2]{0}', space=sflag, size = 0x8, scoped, tag = 'scoped memory for tpu_custom_call.1']
    #allocation10 [shape = 'u8[512]{0}', space=smem, size = 0x200, scoped, tag = 'output window, operand 0, single buffered']
    %8 = vsyncpa [#allocation5], 0
    %9 = vsyncpa [#allocation4], 0
    %s10 = scalar_lea.sflag [#allocation4], 1
    %11 = vsyncpa %s10, 0
    %12 = vsyncpa [#allocation9], 0
    %s13 = scalar_lea.sflag [#allocation9], 1
    %14 = vsyncpa %s13, 0
    %15 = vsyncpa [#allocation6], 0
    loop: start=0, step=1, limit=4
    $region2: #{tpu_custom_call.1} parent=1 // loop_pre_header
      _
    $region3: #{tpu_custom_call.1} parent=1 // loop_header
      %s17 = sphi 0, %s21
      %p18 = scmp.ge.s32.totalorder %s17, 4
      %s25 = sphi 0, %s25
      %s27 = sphi 0, %s25
      %s28 = sphi 0, %s27
      %s42 = sphi 0, %s28
      %s48 = sphi 0, %s50
      %s51 = sphi 0, %s48
      %s52 = sphi 0, %s51
      %s68 = sphi 0, %s52
      %s74 = sphi 0, %s76
      %s77 = sphi 0, %s74
      %s78 = sphi 0, %s77
      %s94 = sphi 0, %s78
      %s98 = sphi 0, %s98
      %s100 = sphi 0, %s98
      %s101 = sphi 0, %s100
      %s115 = sphi 0, %s101
    $region4: #{tpu_custom_call.1} parent=1 // loop_header_branch
      %20 = sbr.rel (%p18) target = $region8
    $region5: #{tpu_custom_call.1} parent=1 // loop_body
      %s22 = ssub.s32 %s17, 1
      %s23 = ssub.s32 %s17, 2
      %s24 = sadd.s32 %s17, 1
      %s26 = sadd.s32 %s25, 1
      %p29 = scmp.eq.s32.totalorder %s17, 1
      %p30 = scmp.ne.s32.totalorder %s25, %s27
      %p31 = scmp.eq.s32.totalorder %s17, 0
      %p32 = por %p30, %p31
      %p33 = scmp.ne.s32.totalorder %s25, %s27
      %p34 = scmp.eq.s32.totalorder %s22, 1
      %p35 = por %p33, %p34
      %p36 = scmp.ne.s32.totalorder %s27, %s28
      %p37 = scmp.eq.s32.totalorder %s22, 0
      %p38 = por %p36, %p37
      %p39 = scmp.ne.s32.totalorder %s27, %s28
      %p40 = scmp.eq.s32.totalorder %s23, 1
      %p41 = por %p39, %p40
      %p43 = scmp.ne.s32.totalorder %s28, %s42
      %p44 = scmp.eq.s32.totalorder %s23, 0
      %p45 = por %p43, %p44
      %s46 = ssub.s32 %s17, %s24
      %p47 = scmp.eq.s32.totalorder %s46, 0
      %s49 = sadd.s32 %s48, 1
      %s50 = scalar_select %p47, %s48, %s49
      %p53 = pneg %p47
      %p54 = scmp.eq.s32.totalorder %s17, 1
      %p55 = por %p53, %p54
      %p56 = scmp.ne.s32.totalorder %s48, %s51
      %p57 = scmp.eq.s32.totalorder %s17, 0
      %p58 = por %p56, %p57
      %p59 = scmp.ne.s32.totalorder %s48, %s51
      %p60 = scmp.eq.s32.totalorder %s22, 1
      %p61 = por %p59, %p60
      %p62 = scmp.ne.s32.totalorder %s51, %s52
      %p63 = scmp.eq.s32.totalorder %s22, 0
      %p64 = por %p62, %p63
      %p65 = scmp.ne.s32.totalorder %s51, %s52
      %p66 = scmp.eq.s32.totalorder %s23, 1
      %p67 = por %p65, %p66
      %p69 = scmp.ne.s32.totalorder %s52, %s68
      %p70 = scmp.eq.s32.totalorder %s23, 0
      %p71 = por %p69, %p70
      %s72 = ssub.s32 %s17, %s24
      %p73 = scmp.eq.s32.totalorder %s72, 0
      %s75 = sadd.s32 %s74, 1
      %s76 = scalar_select %p73, %s74, %s75
      %p79 = pneg %p73
      %p80 = scmp.eq.s32.totalorder %s17, 1
      %p81 = por %p79, %p80
      %p82 = scmp.ne.s32.totalorder %s74, %s77
      %p83 = scmp.eq.s32.totalorder %s17, 0
      %p84 = por %p82, %p83
      %p85 = scmp.ne.s32.totalorder %s74, %s77
      %p86 = scmp.eq.s32.totalorder %s22, 1
      %p87 = por %p85, %p86
      %p88 = scmp.ne.s32.totalorder %s77, %s78
      %p89 = scmp.eq.s32.totalorder %s22, 0
      %p90 = por %p88, %p89
      %p91 = scmp.ne.s32.totalorder %s77, %s78
      %p92 = scmp.eq.s32.totalorder %s23, 1
      %p93 = por %p91, %p92
      %p95 = scmp.ne.s32.totalorder %s78, %s94
      %p96 = scmp.eq.s32.totalorder %s23, 0
      %p97 = por %p95, %p96
      %s99 = sadd.s32 %s98, 1
      %p102 = scmp.eq.s32.totalorder %s17, 1
      %p103 = scmp.ne.s32.totalorder %s98, %s100
      %p104 = scmp.eq.s32.totalorder %s17, 0
      %p105 = por %p103, %p104
      %p106 = scmp.ne.s32.totalorder %s98, %s100
      %p107 = scmp.eq.s32.totalorder %s22, 1
      %p108 = por %p106, %p107
      %p109 = scmp.ne.s32.totalorder %s100, %s101
      %p110 = scmp.eq.s32.totalorder %s22, 0
      %p111 = por %p109, %p110
      %p112 = scmp.ne.s32.totalorder %s100, %s101
      %p113 = scmp.eq.s32.totalorder %s23, 1
      %p114 = por %p112, %p113
      %p116 = scmp.ne.s32.totalorder %s101, %s115
      %p117 = scmp.eq.s32.totalorder %s23, 0
      %p118 = por %p116, %p117
      %p119 = scmp.le.s32.totalorder 1, %s17
      %p120 = scmp.lt.s32.totalorder %s17, 3
      %p121 = pnand %p119, %p120
      %p122 = pneg %p121
      // Predicated region
      $region9: #{tpu_custom_call.1} parent=5 // pred_check
        _
      $region10: #{tpu_custom_call.1} parent=5 // pred_check_branch
        %124 = sbr.rel (%p121) target = $region12
      $region11: #{tpu_custom_call.1} parent=5 // pred_region
        %s125 = ssub.s32 %s17, 1
        // Predicated region
        $region13: #{tpu_custom_call.1} parent=11 // pred_check
          %p126 = pneg %p38
        $region14: #{tpu_custom_call.1} parent=11 // pred_check_branch
          %128 = sbr.rel (%p126) target = $region16
        $region15: #{tpu_custom_call.1} parent=11 // pred_region
          %s130 = ssub.s32 16, 16
          %131 = vsyncadd [#allocation5], %s130
          %134 = dma.hbm_to_smem %s0, 16, [#allocation3], [#allocation5]
        $region16: #{tpu_custom_call.1} parent=11 // pred_fallthru
          _
      $region12: #{tpu_custom_call.1} parent=5 // pred_fallthru
        _
      %p135 = scmp.lt.s32.totalorder %s17, 2
      // Predicated region
      $region17: #{tpu_custom_call.1} parent=5 // pred_check
        %p136 = pneg %p135
      $region18: #{tpu_custom_call.1} parent=5 // pred_check_branch
        %138 = sbr.rel (%p136) target = $region20
      $region19: #{tpu_custom_call.1} parent=5 // pred_region
        // Predicated region
        $region21: #{tpu_custom_call.1} parent=19 // pred_check
          %p139 = pneg %p58
        $region22: #{tpu_custom_call.1} parent=19 // pred_check_branch
          %141 = sbr.rel (%p139) target = $region24
        $region23: #{tpu_custom_call.1} parent=19 // pred_region
          %s142 = sand.u32 %s48, 1
          %s143 = scalar_lea.sflag [#allocation4], %s142
          %s144 = sand.u32 %s48, 1
          %s145 = smul.addr %s144, 512
          %s146 = scalar_lea.vmem [#allocation7], %s145
          %s147 = smul.u32 64, %s17
          %s149 = ssub.s32 8192, 8192
          %150 = vsyncadd %s143, %s149
          %s151 = smul.addr %s147, 128
          %s152 = scalar_lea.hbm %s1, %s151
          %s153 = sshll.u32 %s146, 4
          %s154 = int_to_ptr.vmem [resolvable:$true] %s153
          %159 = dma.hbm_to_vmem [thread:$0]  %s152, 8192, %s154, %s143, 128, 128, 8
        $region24: #{tpu_custom_call.1} parent=19 // pred_fallthru
          _
        // Predicated region
        $region25: #{tpu_custom_call.1} parent=19 // pred_check
          %p160 = pneg %p84
        $region26: #{tpu_custom_call.1} parent=19 // pred_check_branch
          %162 = sbr.rel (%p160) target = $region28
        $region27: #{tpu_custom_call.1} parent=19 // pred_region
          %s163 = sand.u32 %s74, 1
          %s164 = scalar_lea.sflag [#allocation9], %s163
          %s165 = sand.u32 %s74, 1
          %s166 = smul.addr %s165, 512
          %s167 = scalar_lea.vmem [#allocation8], %s166
          %s168 = smul.u32 64, %s17
          %s170 = ssub.s32 8192, 8192
          %171 = vsyncadd %s164, %s170
          %s172 = smul.addr %s168, 128
          %s173 = scalar_lea.hbm %s2, %s172
          %s174 = sshll.u32 %s167, 4
          %s175 = int_to_ptr.vmem [resolvable:$true] %s174
          %180 = dma.hbm_to_vmem [thread:$0]  %s173, 8192, %s175, %s164, 128, 128, 8
        $region28: #{tpu_custom_call.1} parent=19 // pred_fallthru
          _
      $region20: #{tpu_custom_call.1} parent=5 // pred_fallthru
        _
      %p181 = scmp.le.s32.totalorder 1, %s17
      %p182 = scmp.lt.s32.totalorder %s17, 3
      %p183 = pnand %p181, %p182
      %p184 = pneg %p183
      // Predicated region
      $region29: #{tpu_custom_call.1} parent=5 // pred_check
        _
      $region30: #{tpu_custom_call.1} parent=5 // pred_check_branch
        %186 = sbr.rel (%p183) target = $region32
      $region31: #{tpu_custom_call.1} parent=5 // pred_region
        %s187 = ssub.s32 %s17, 1
        // Predicated region
        $region33: #{tpu_custom_call.1} parent=31 // pred_check
          %p188 = pneg %p38
        $region34: #{tpu_custom_call.1} parent=31 // pred_check_branch
          %190 = sbr.rel (%p188) target = $region36
        $region35: #{tpu_custom_call.1} parent=31 // pred_region
          %191 = dma.done [#allocation5], 16
        $region36: #{tpu_custom_call.1} parent=31 // pred_fallthru
          _
        %s192 = sand.u32 %s51, 1
        %s193 = scalar_lea.sflag [#allocation4], %s192
        %s194 = sand.u32 %s51, 1
        %s195 = smul.addr %s194, 512
        %s196 = scalar_lea.vmem [#allocation7], %s195
        // Predicated region
        $region37: #{tpu_custom_call.1} parent=31 // pred_check
          %p197 = pneg %p64
        $region38: #{tpu_custom_call.1} parent=31 // pred_check_branch
          %199 = sbr.rel (%p197) target = $region40
        $region39: #{tpu_custom_call.1} parent=31 // pred_region
          %200 = dma.done %s193, 8192
        $region40: #{tpu_custom_call.1} parent=31 // pred_fallthru
          _
        %s201 = sand.u32 %s77, 1
        %s202 = scalar_lea.sflag [#allocation9], %s201
        %s203 = sand.u32 %s77, 1
        %s204 = smul.addr %s203, 512
        %s205 = scalar_lea.vmem [#allocation8], %s204
        // Predicated region
        $region41: #{tpu_custom_call.1} parent=31 // pred_check
          %p206 = pneg %p90
        $region42: #{tpu_custom_call.1} parent=31 // pred_check_branch
          %208 = sbr.rel (%p206) target = $region44
        $region43: #{tpu_custom_call.1} parent=31 // pred_region
          %209 = dma.done %s202, 8192
        $region44: #{tpu_custom_call.1} parent=31 // pred_fallthru
          _
        %210 = sfence
        %p211 = pneg %p38
        %p212 = pneg %p35
        %s213 = sand.u32 %s51, 1
        %s214 = scalar_lea.sflag [#allocation4], %s213
        %s215 = sand.u32 %s51, 1
        %s216 = smul.addr %s215, 512
        %s217 = scalar_lea.vmem [#allocation7], %s216
        %p218 = pneg %p64
        %p219 = pneg %p61
        %s220 = sand.u32 %s77, 1
        %s221 = scalar_lea.sflag [#allocation9], %s220
        %s222 = sand.u32 %s77, 1
        %s223 = smul.addr %s222, 512
        %s224 = scalar_lea.vmem [#allocation8], %s223
        %p225 = pneg %p90
        %p226 = pneg %p87
        %p227 = pneg %p111
        %p228 = pneg %p108
        %s229 = smul.u32 64, %s22
        %s230 = smul.u32 64, %s22
        %p231 = scmp.eq.s32.totalorder %s22, 0
        // Predicated region
        $region45: #{tpu_custom_call.1} parent=31 // pred_check
          %p232 = pneg %p231
        $region46: #{tpu_custom_call.1} parent=31 // pred_check_branch
          %234 = sbr.rel (%p232) target = $region48
        $region47: #{tpu_custom_call.1} parent=31 // pred_region
          %235 = vst [vmem:[#allocation2] sm:$0xff] 0.0
          %236 = vst [vmem:[#allocation2 + $0x8] sm:$0xff] 0.0
          %237 = vst [vmem:[#allocation2 + $0x10] sm:$0xff] 0.0
          %238 = vst [vmem:[#allocation2 + $0x18] sm:$0xff] 0.0
          %239 = vst [vmem:[#allocation2 + $0x20] sm:$0xff] 0.0
          %240 = vst [vmem:[#allocation2 + $0x28] sm:$0xff] 0.0
          %241 = vst [vmem:[#allocation2 + $0x30] sm:$0xff] 0.0
          %242 = vst [vmem:[#allocation2 + $0x38] sm:$0xff] 0.0
          %243 = vst [vmem:[#allocation2 + $0x40] sm:$0xff] 0.0
          %244 = vst [vmem:[#allocation2 + $0x48] sm:$0xff] 0.0
          %245 = vst [vmem:[#allocation2 + $0x50] sm:$0xff] 0.0
          %246 = vst [vmem:[#allocation2 + $0x58] sm:$0xff] 0.0
          %247 = vst [vmem:[#allocation2 + $0x60] sm:$0xff] 0.0
          %248 = vst [vmem:[#allocation2 + $0x68] sm:$0xff] 0.0
          %249 = vst [vmem:[#allocation2 + $0x70] sm:$0xff] 0.0
          %250 = vst [vmem:[#allocation2 + $0x78] sm:$0xff] 0.0
          %251 = vst [vmem:[#allocation2 + $0x80] sm:$0xff] 0.0
          %252 = vst [vmem:[#allocation2 + $0x88] sm:$0xff] 0.0
          %253 = vst [vmem:[#allocation2 + $0x90] sm:$0xff] 0.0
          %254 = vst [vmem:[#allocation2 + $0x98] sm:$0xff] 0.0
          %255 = vst [vmem:[#allocation2 + $0xa0] sm:$0xff] 0.0
          %256 = vst [vmem:[#allocation2 + $0xa8] sm:$0xff] 0.0
          %257 = vst [vmem:[#allocation2 + $0xb0] sm:$0xff] 0.0
          %258 = vst [vmem:[#allocation2 + $0xb8] sm:$0xff] 0.0
          %259 = vst [vmem:[#allocation2 + $0xc0] sm:$0xff] 0.0
          %260 = vst [vmem:[#allocation2 + $0xc8] sm:$0xff] 0.0
          %261 = vst [vmem:[#allocation2 + $0xd0] sm:$0xff] 0.0
          %262 = vst [vmem:[#allocation2 + $0xd8] sm:$0xff] 0.0
          %263 = vst [vmem:[#allocation2 + $0xe0] sm:$0xff] 0.0
          %264 = vst [vmem:[#allocation2 + $0xe8] sm:$0xff] 0.0
          %265 = vst [vmem:[#allocation2 + $0xf0] sm:$0xff] 0.0
          %266 = vst [vmem:[#allocation2 + $0xf8] sm:$0xff] 0.0
          %267 = vst [vmem:[#allocation2 + $0x100] sm:$0xff] 0.0
          %268 = vst [vmem:[#allocation2 + $0x108] sm:$0xff] 0.0
          %269 = vst [vmem:[#allocation2 + $0x110] sm:$0xff] 0.0
          %270 = vst [vmem:[#allocation2 + $0x118] sm:$0xff] 0.0
          %271 = vst [vmem:[#allocation2 + $0x120] sm:$0xff] 0.0
          %272 = vst [vmem:[#allocation2 + $0x128] sm:$0xff] 0.0
          %273 = vst [vmem:[#allocation2 + $0x130] sm:$0xff] 0.0
          %274 = vst [vmem:[#allocation2 + $0x138] sm:$0xff] 0.0
          %275 = vst [vmem:[#allocation2 + $0x140] sm:$0xff] 0.0
          %276 = vst [vmem:[#allocation2 + $0x148] sm:$0xff] 0.0
          %277 = vst [vmem:[#allocation2 + $0x150] sm:$0xff] 0.0
          %278 = vst [vmem:[#allocation2 + $0x158] sm:$0xff] 0.0
          %279 = vst [vmem:[#allocation2 + $0x160] sm:$0xff] 0.0
          %280 = vst [vmem:[#allocation2 + $0x168] sm:$0xff] 0.0
          %281 = vst [vmem:[#allocation2 + $0x170] sm:$0xff] 0.0
          %282 = vst [vmem:[#allocation2 + $0x178] sm:$0xff] 0.0
          %283 = vst [vmem:[#allocation2 + $0x180] sm:$0xff] 0.0
          %284 = vst [vmem:[#allocation2 + $0x188] sm:$0xff] 0.0
          %285 = vst [vmem:[#allocation2 + $0x190] sm:$0xff] 0.0
          %286 = vst [vmem:[#allocation2 + $0x198] sm:$0xff] 0.0
          %287 = vst [vmem:[#allocation2 + $0x1a0] sm:$0xff] 0.0
          %288 = vst [vmem:[#allocation2 + $0x1a8] sm:$0xff] 0.0
          %289 = vst [vmem:[#allocation2 + $0x1b0] sm:$0xff] 0.0
          %290 = vst [vmem:[#allocation2 + $0x1b8] sm:$0xff] 0.0
          %291 = vst [vmem:[#allocation2 + $0x1c0] sm:$0xff] 0.0
          %292 = vst [vmem:[#allocation2 + $0x1c8] sm:$0xff] 0.0
          %293 = vst [vmem:[#allocation2 + $0x1d0] sm:$0xff] 0.0
          %294 = vst [vmem:[#allocation2 + $0x1d8] sm:$0xff] 0.0
          %295 = vst [vmem:[#allocation2 + $0x1e0] sm:$0xff] 0.0
          %296 = vst [vmem:[#allocation2 + $0x1e8] sm:$0xff] 0.0
          %297 = vst [vmem:[#allocation2 + $0x1f0] sm:$0xff] 0.0
          %298 = vst [vmem:[#allocation2 + $0x1f8] sm:$0xff] 0.0
        $region48: #{tpu_custom_call.1} parent=31 // pred_fallthru
          _
        %s299 = sld [smem:[#allocation3]]
        %s300 = sld [smem:[#allocation3 + $0x1]]
        %s301 = ssub.f32 %s300, %s299
        %v302 = vld [vmem:[%s196] sm:$0xff]
        %v303 = vld [vmem:[%s196 + $0x8] sm:$0xff]
        %v304 = vld [vmem:[%s196 + $0x10] sm:$0xff]
        %v305 = vld [vmem:[%s196 + $0x18] sm:$0xff]
        %v306 = vld [vmem:[%s196 + $0x20] sm:$0xff]
        %v307 = vld [vmem:[%s196 + $0x28] sm:$0xff]
        %v308 = vld [vmem:[%s196 + $0x30] sm:$0xff]
        %v309 = vld [vmem:[%s196 + $0x38] sm:$0xff]
        %v310 = vld [vmem:[%s196 + $0x40] sm:$0xff]
        %v311 = vld [vmem:[%s196 + $0x48] sm:$0xff]
        %v312 = vld [vmem:[%s196 + $0x50] sm:$0xff]
        %v313 = vld [vmem:[%s196 + $0x58] sm:$0xff]
        %v314 = vld [vmem:[%s196 + $0x60] sm:$0xff]
        %v315 = vld [vmem:[%s196 + $0x68] sm:$0xff]
        %v316 = vld [vmem:[%s196 + $0x70] sm:$0xff]
        %v317 = vld [vmem:[%s196 + $0x78] sm:$0xff]
        %v318 = vld [vmem:[%s196 + $0x80] sm:$0xff]
        %v319 = vld [vmem:[%s196 + $0x88] sm:$0xff]
        %v320 = vld [vmem:[%s196 + $0x90] sm:$0xff]
        %v321 = vld [vmem:[%s196 + $0x98] sm:$0xff]
        %v322 = vld [vmem:[%s196 + $0xa0] sm:$0xff]
        %v323 = vld [vmem:[%s196 + $0xa8] sm:$0xff]
        %v324 = vld [vmem:[%s196 + $0xb0] sm:$0xff]
        %v325 = vld [vmem:[%s196 + $0xb8] sm:$0xff]
        %v326 = vld [vmem:[%s196 + $0xc0] sm:$0xff]
        %v327 = vld [vmem:[%s196 + $0xc8] sm:$0xff]
        %v328 = vld [vmem:[%s196 + $0xd0] sm:$0xff]
        %v329 = vld [vmem:[%s196 + $0xd8] sm:$0xff]
        %v330 = vld [vmem:[%s196 + $0xe0] sm:$0xff]
        %v331 = vld [vmem:[%s196 + $0xe8] sm:$0xff]
        %v332 = vld [vmem:[%s196 + $0xf0] sm:$0xff]
        %v333 = vld [vmem:[%s196 + $0xf8] sm:$0xff]
        %v334 = vld [vmem:[%s196 + $0x100] sm:$0xff]
        %v335 = vld [vmem:[%s196 + $0x108] sm:$0xff]
        %v336 = vld [vmem:[%s196 + $0x110] sm:$0xff]
        %v337 = vld [vmem:[%s196 + $0x118] sm:$0xff]
        %v338 = vld [vmem:[%s196 + $0x120] sm:$0xff]
        %v339 = vld [vmem:[%s196 + $0x128] sm:$0xff]
        %v340 = vld [vmem:[%s196 + $0x130] sm:$0xff]
        %v341 = vld [vmem:[%s196 + $0x138] sm:$0xff]
        %v342 = vld [vmem:[%s196 + $0x140] sm:$0xff]
        %v343 = vld [vmem:[%s196 + $0x148] sm:$0xff]
        %v344 = vld [vmem:[%s196 + $0x150] sm:$0xff]
        %v345 = vld [vmem:[%s196 + $0x158] sm:$0xff]
        %v346 = vld [vmem:[%s196 + $0x160] sm:$0xff]
        %v347 = vld [vmem:[%s196 + $0x168] sm:$0xff]
        %v348 = vld [vmem:[%s196 + $0x170] sm:$0xff]
        %v349 = vld [vmem:[%s196 + $0x178] sm:$0xff]
        %v350 = vld [vmem:[%s196 + $0x180] sm:$0xff]
        %v351 = vld [vmem:[%s196 + $0x188] sm:$0xff]
        %v352 = vld [vmem:[%s196 + $0x190] sm:$0xff]
        %v353 = vld [vmem:[%s196 + $0x198] sm:$0xff]
        %v354 = vld [vmem:[%s196 + $0x1a0] sm:$0xff]
        %v355 = vld [vmem:[%s196 + $0x1a8] sm:$0xff]
        %v356 = vld [vmem:[%s196 + $0x1b0] sm:$0xff]
        %v357 = vld [vmem:[%s196 + $0x1b8] sm:$0xff]
        %v358 = vld [vmem:[%s196 + $0x1c0] sm:$0xff]
        %v359 = vld [vmem:[%s196 + $0x1c8] sm:$0xff]
        %v360 = vld [vmem:[%s196 + $0x1d0] sm:$0xff]
        %v361 = vld [vmem:[%s196 + $0x1d8] sm:$0xff]
        %v362 = vld [vmem:[%s196 + $0x1e0] sm:$0xff]
        %v363 = vld [vmem:[%s196 + $0x1e8] sm:$0xff]
        %v364 = vld [vmem:[%s196 + $0x1f0] sm:$0xff]
        %v365 = vld [vmem:[%s196 + $0x1f8] sm:$0xff]
        %v366 = vld [vmem:[%s205] sm:$0xff]
        %v367 = vld [vmem:[%s205 + $0x8] sm:$0xff]
        %v368 = vld [vmem:[%s205 + $0x10] sm:$0xff]
        %v369 = vld [vmem:[%s205 + $0x18] sm:$0xff]
        %v370 = vld [vmem:[%s205 + $0x20] sm:$0xff]
        %v371 = vld [vmem:[%s205 + $0x28] sm:$0xff]
        %v372 = vld [vmem:[%s205 + $0x30] sm:$0xff]
        %v373 = vld [vmem:[%s205 + $0x38] sm:$0xff]
        %v374 = vld [vmem:[%s205 + $0x40] sm:$0xff]
        %v375 = vld [vmem:[%s205 + $0x48] sm:$0xff]
        %v376 = vld [vmem:[%s205 + $0x50] sm:$0xff]
        %v377 = vld [vmem:[%s205 + $0x58] sm:$0xff]
        %v378 = vld [vmem:[%s205 + $0x60] sm:$0xff]
        %v379 = vld [vmem:[%s205 + $0x68] sm:$0xff]
        %v380 = vld [vmem:[%s205 + $0x70] sm:$0xff]
        %v381 = vld [vmem:[%s205 + $0x78] sm:$0xff]
        %v382 = vld [vmem:[%s205 + $0x80] sm:$0xff]
        %v383 = vld [vmem:[%s205 + $0x88] sm:$0xff]
        %v384 = vld [vmem:[%s205 + $0x90] sm:$0xff]
        %v385 = vld [vmem:[%s205 + $0x98] sm:$0xff]
        %v386 = vld [vmem:[%s205 + $0xa0] sm:$0xff]
        %v387 = vld [vmem:[%s205 + $0xa8] sm:$0xff]
        %v388 = vld [vmem:[%s205 + $0xb0] sm:$0xff]
        %v389 = vld [vmem:[%s205 + $0xb8] sm:$0xff]
        %v390 = vld [vmem:[%s205 + $0xc0] sm:$0xff]
        %v391 = vld [vmem:[%s205 + $0xc8] sm:$0xff]
        %v392 = vld [vmem:[%s205 + $0xd0] sm:$0xff]
        %v393 = vld [vmem:[%s205 + $0xd8] sm:$0xff]
        %v394 = vld [vmem:[%s205 + $0xe0] sm:$0xff]
        %v395 = vld [vmem:[%s205 + $0xe8] sm:$0xff]
        %v396 = vld [vmem:[%s205 + $0xf0] sm:$0xff]
        %v397 = vld [vmem:[%s205 + $0xf8] sm:$0xff]
        %v398 = vld [vmem:[%s205 + $0x100] sm:$0xff]
        %v399 = vld [vmem:[%s205 + $0x108] sm:$0xff]
        %v400 = vld [vmem:[%s205 + $0x110] sm:$0xff]
        %v401 = vld [vmem:[%s205 + $0x118] sm:$0xff]
        %v402 = vld [vmem:[%s205 + $0x120] sm:$0xff]
        %v403 = vld [vmem:[%s205 + $0x128] sm:$0xff]
        %v404 = vld [vmem:[%s205 + $0x130] sm:$0xff]
        %v405 = vld [vmem:[%s205 + $0x138] sm:$0xff]
        %v406 = vld [vmem:[%s205 + $0x140] sm:$0xff]
        %v407 = vld [vmem:[%s205 + $0x148] sm:$0xff]
        %v408 = vld [vmem:[%s205 + $0x150] sm:$0xff]
        %v409 = vld [vmem:[%s205 + $0x158] sm:$0xff]
        %v410 = vld [vmem:[%s205 + $0x160] sm:$0xff]
        %v411 = vld [vmem:[%s205 + $0x168] sm:$0xff]
        %v412 = vld [vmem:[%s205 + $0x170] sm:$0xff]
        %v413 = vld [vmem:[%s205 + $0x178] sm:$0xff]
        %v414 = vld [vmem:[%s205 + $0x180] sm:$0xff]
        %v415 = vld [vmem:[%s205 + $0x188] sm:$0xff]
        %v416 = vld [vmem:[%s205 + $0x190] sm:$0xff]
        %v417 = vld [vmem:[%s205 + $0x198] sm:$0xff]
        %v418 = vld [vmem:[%s205 + $0x1a0] sm:$0xff]
        %v419 = vld [vmem:[%s205 + $0x1a8] sm:$0xff]
        %v420 = vld [vmem:[%s205 + $0x1b0] sm:$0xff]
        %v421 = vld [vmem:[%s205 + $0x1b8] sm:$0xff]
        %v422 = vld [vmem:[%s205 + $0x1c0] sm:$0xff]
        %v423 = vld [vmem:[%s205 + $0x1c8] sm:$0xff]
        %v424 = vld [vmem:[%s205 + $0x1d0] sm:$0xff]
        %v425 = vld [vmem:[%s205 + $0x1d8] sm:$0xff]
        %v426 = vld [vmem:[%s205 + $0x1e0] sm:$0xff]
        %v427 = vld [vmem:[%s205 + $0x1e8] sm:$0xff]
        %v428 = vld [vmem:[%s205 + $0x1f0] sm:$0xff]
        %v429 = vld [vmem:[%s205 + $0x1f8] sm:$0xff]
        %v430 = vadd.f32 %v366, 1.0
        %v431 = vlog2.pop %v430
        %v432 = vmul.f32 %v431, 0.6931472
        %v433 = vmul.f32 -0.5, %v366
        %v434 = vadd.f32 %v433, 1.0
        %v435 = vmul.f32 %v434, %v366
        %v436 = vand.u32 2147483647, %v366
        %vm437 = vcmp.lt.f32.partialorder %v436, 0.0004427343
        %v438 = vsel %vm437, %v435, %v432
        %v439 = vadd.f32 %v367, 1.0
        %v440 = vlog2.pop %v439
        %v441 = vmul.f32 %v440, 0.6931472
        %v442 = vmul.f32 -0.5, %v367
        %v443 = vadd.f32 %v442, 1.0
        %v444 = vmul.f32 %v443, %v367
        %v445 = vand.u32 2147483647, %v367
        %vm446 = vcmp.lt.f32.partialorder %v445, 0.0004427343
        %v447 = vsel %vm446, %v444, %v441
        %v448 = vadd.f32 %v368, 1.0
        %v449 = vlog2.pop %v448
        %v450 = vmul.f32 %v449, 0.6931472
        %v451 = vmul.f32 -0.5, %v368
        %v452 = vadd.f32 %v451, 1.0
        %v453 = vmul.f32 %v452, %v368
        %v454 = vand.u32 2147483647, %v368
        %vm455 = vcmp.lt.f32.partialorder %v454, 0.0004427343
        %v456 = vsel %vm455, %v453, %v450
        %v457 = vadd.f32 %v369, 1.0
        %v458 = vlog2.pop %v457
        %v459 = vmul.f32 %v458, 0.6931472
        %v460 = vmul.f32 -0.5, %v369
        %v461 = vadd.f32 %v460, 1.0
        %v462 = vmul.f32 %v461, %v369
        %v463 = vand.u32 2147483647, %v369
        %vm464 = vcmp.lt.f32.partialorder %v463, 0.0004427343
        %v465 = vsel %vm464, %v462, %v459
        %v466 = vadd.f32 %v370, 1.0
        %v467 = vlog2.pop %v466
        %v468 = vmul.f32 %v467, 0.6931472
        %v469 = vmul.f32 -0.5, %v370
        %v470 = vadd.f32 %v469, 1.0
        %v471 = vmul.f32 %v470, %v370
        %v472 = vand.u32 2147483647, %v370
        %vm473 = vcmp.lt.f32.partialorder %v472, 0.0004427343
        %v474 = vsel %vm473, %v471, %v468
        %v475 = vadd.f32 %v371, 1.0
        %v476 = vlog2.pop %v475
        %v477 = vmul.f32 %v476, 0.6931472
        %v478 = vmul.f32 -0.5, %v371
        %v479 = vadd.f32 %v478, 1.0
        %v480 = vmul.f32 %v479, %v371
        %v481 = vand.u32 2147483647, %v371
        %vm482 = vcmp.lt.f32.partialorder %v481, 0.0004427343
        %v483 = vsel %vm482, %v480, %v477
        %v484 = vadd.f32 %v372, 1.0
        %v485 = vlog2.pop %v484
        %v486 = vmul.f32 %v485, 0.6931472
        %v487 = vmul.f32 -0.5, %v372
        %v488 = vadd.f32 %v487, 1.0
        %v489 = vmul.f32 %v488, %v372
        %v490 = vand.u32 2147483647, %v372
        %vm491 = vcmp.lt.f32.partialorder %v490, 0.0004427343
        %v492 = vsel %vm491, %v489, %v486
        %v493 = vadd.f32 %v373, 1.0
        %v494 = vlog2.pop %v493
        %v495 = vmul.f32 %v494, 0.6931472
        %v496 = vmul.f32 -0.5, %v373
        %v497 = vadd.f32 %v496, 1.0
        %v498 = vmul.f32 %v497, %v373
        %v499 = vand.u32 2147483647, %v373
        %vm500 = vcmp.lt.f32.partialorder %v499, 0.0004427343
        %v501 = vsel %vm500, %v498, %v495
        %v502 = vadd.f32 %v374, 1.0
        %v503 = vlog2.pop %v502
        %v504 = vmul.f32 %v503, 0.6931472
        %v505 = vmul.f32 -0.5, %v374
        %v506 = vadd.f32 %v505, 1.0
        %v507 = vmul.f32 %v506, %v374
        %v508 = vand.u32 2147483647, %v374
        %vm509 = vcmp.lt.f32.partialorder %v508, 0.0004427343
        %v510 = vsel %vm509, %v507, %v504
        %v511 = vadd.f32 %v375, 1.0
        %v512 = vlog2.pop %v511
        %v513 = vmul.f32 %v512, 0.6931472
        %v514 = vmul.f32 -0.5, %v375
        %v515 = vadd.f32 %v514, 1.0
        %v516 = vmul.f32 %v515, %v375
        %v517 = vand.u32 2147483647, %v375
        %vm518 = vcmp.lt.f32.partialorder %v517, 0.0004427343
        %v519 = vsel %vm518, %v516, %v513
        %v520 = vadd.f32 %v376, 1.0
        %v521 = vlog2.pop %v520
        %v522 = vmul.f32 %v521, 0.6931472
        %v523 = vmul.f32 -0.5, %v376
        %v524 = vadd.f32 %v523, 1.0
        %v525 = vmul.f32 %v524, %v376
        %v526 = vand.u32 2147483647, %v376
        %vm527 = vcmp.lt.f32.partialorder %v526, 0.0004427343
        %v528 = vsel %vm527, %v525, %v522
        %v529 = vadd.f32 %v377, 1.0
        %v530 = vlog2.pop %v529
        %v531 = vmul.f32 %v530, 0.6931472
        %v532 = vmul.f32 -0.5, %v377
        %v533 = vadd.f32 %v532, 1.0
        %v534 = vmul.f32 %v533, %v377
        %v535 = vand.u32 2147483647, %v377
        %vm536 = vcmp.lt.f32.partialorder %v535, 0.0004427343
        %v537 = vsel %vm536, %v534, %v531
        %v538 = vadd.f32 %v378, 1.0
        %v539 = vlog2.pop %v538
        %v540 = vmul.f32 %v539, 0.6931472
        %v541 = vmul.f32 -0.5, %v378
        %v542 = vadd.f32 %v541, 1.0
        %v543 = vmul.f32 %v542, %v378
        %v544 = vand.u32 2147483647, %v378
        %vm545 = vcmp.lt.f32.partialorder %v544, 0.0004427343
        %v546 = vsel %vm545, %v543, %v540
        %v547 = vadd.f32 %v379, 1.0
        %v548 = vlog2.pop %v547
        %v549 = vmul.f32 %v548, 0.6931472
        %v550 = vmul.f32 -0.5, %v379
        %v551 = vadd.f32 %v550, 1.0
        %v552 = vmul.f32 %v551, %v379
        %v553 = vand.u32 2147483647, %v379
        %vm554 = vcmp.lt.f32.partialorder %v553, 0.0004427343
        %v555 = vsel %vm554, %v552, %v549
        %v556 = vadd.f32 %v380, 1.0
        %v557 = vlog2.pop %v556
        %v558 = vmul.f32 %v557, 0.6931472
        %v559 = vmul.f32 -0.5, %v380
        %v560 = vadd.f32 %v559, 1.0
        %v561 = vmul.f32 %v560, %v380
        %v562 = vand.u32 2147483647, %v380
        %vm563 = vcmp.lt.f32.partialorder %v562, 0.0004427343
        %v564 = vsel %vm563, %v561, %v558
        %v565 = vadd.f32 %v381, 1.0
        %v566 = vlog2.pop %v565
        %v567 = vmul.f32 %v566, 0.6931472
        %v568 = vmul.f32 -0.5, %v381
        %v569 = vadd.f32 %v568, 1.0
        %v570 = vmul.f32 %v569, %v381
        %v571 = vand.u32 2147483647, %v381
        %vm572 = vcmp.lt.f32.partialorder %v571, 0.0004427343
        %v573 = vsel %vm572, %v570, %v567
        %v574 = vadd.f32 %v382, 1.0
        %v575 = vlog2.pop %v574
        %v576 = vmul.f32 %v575, 0.6931472
        %v577 = vmul.f32 -0.5, %v382
        %v578 = vadd.f32 %v577, 1.0
        %v579 = vmul.f32 %v578, %v382
        %v580 = vand.u32 2147483647, %v382
        %vm581 = vcmp.lt.f32.partialorder %v580, 0.0004427343
        %v582 = vsel %vm581, %v579, %v576
        %v583 = vadd.f32 %v383, 1.0
        %v584 = vlog2.pop %v583
        %v585 = vmul.f32 %v584, 0.6931472
        %v586 = vmul.f32 -0.5, %v383
        %v587 = vadd.f32 %v586, 1.0
        %v588 = vmul.f32 %v587, %v383
        %v589 = vand.u32 2147483647, %v383
        %vm590 = vcmp.lt.f32.partialorder %v589, 0.0004427343
        %v591 = vsel %vm590, %v588, %v585
        %v592 = vadd.f32 %v384, 1.0
        %v593 = vlog2.pop %v592
        %v594 = vmul.f32 %v593, 0.6931472
        %v595 = vmul.f32 -0.5, %v384
        %v596 = vadd.f32 %v595, 1.0
        %v597 = vmul.f32 %v596, %v384
        %v598 = vand.u32 2147483647, %v384
        %vm599 = vcmp.lt.f32.partialorder %v598, 0.0004427343
        %v600 = vsel %vm599, %v597, %v594
        %v601 = vadd.f32 %v385, 1.0
        %v602 = vlog2.pop %v601
        %v603 = vmul.f32 %v602, 0.6931472
        %v604 = vmul.f32 -0.5, %v385
        %v605 = vadd.f32 %v604, 1.0
        %v606 = vmul.f32 %v605, %v385
        %v607 = vand.u32 2147483647, %v385
        %vm608 = vcmp.lt.f32.partialorder %v607, 0.0004427343
        %v609 = vsel %vm608, %v606, %v603
        %v610 = vadd.f32 %v386, 1.0
        %v611 = vlog2.pop %v610
        %v612 = vmul.f32 %v611, 0.6931472
        %v613 = vmul.f32 -0.5, %v386
        %v614 = vadd.f32 %v613, 1.0
        %v615 = vmul.f32 %v614, %v386
        %v616 = vand.u32 2147483647, %v386
        %vm617 = vcmp.lt.f32.partialorder %v616, 0.0004427343
        %v618 = vsel %vm617, %v615, %v612
        %v619 = vadd.f32 %v387, 1.0
        %v620 = vlog2.pop %v619
        %v621 = vmul.f32 %v620, 0.6931472
        %v622 = vmul.f32 -0.5, %v387
        %v623 = vadd.f32 %v622, 1.0
        %v624 = vmul.f32 %v623, %v387
        %v625 = vand.u32 2147483647, %v387
        %vm626 = vcmp.lt.f32.partialorder %v625, 0.0004427343
        %v627 = vsel %vm626, %v624, %v621
        %v628 = vadd.f32 %v388, 1.0
        %v629 = vlog2.pop %v628
        %v630 = vmul.f32 %v629, 0.6931472
        %v631 = vmul.f32 -0.5, %v388
        %v632 = vadd.f32 %v631, 1.0
        %v633 = vmul.f32 %v632, %v388
        %v634 = vand.u32 2147483647, %v388
        %vm635 = vcmp.lt.f32.partialorder %v634, 0.0004427343
        %v636 = vsel %vm635, %v633, %v630
        %v637 = vadd.f32 %v389, 1.0
        %v638 = vlog2.pop %v637
        %v639 = vmul.f32 %v638, 0.6931472
        %v640 = vmul.f32 -0.5, %v389
        %v641 = vadd.f32 %v640, 1.0
        %v642 = vmul.f32 %v641, %v389
        %v643 = vand.u32 2147483647, %v389
        %vm644 = vcmp.lt.f32.partialorder %v643, 0.0004427343
        %v645 = vsel %vm644, %v642, %v639
        %v646 = vadd.f32 %v390, 1.0
        %v647 = vlog2.pop %v646
        %v648 = vmul.f32 %v647, 0.6931472
        %v649 = vmul.f32 -0.5, %v390
        %v650 = vadd.f32 %v649, 1.0
        %v651 = vmul.f32 %v650, %v390
        %v652 = vand.u32 2147483647, %v390
        %vm653 = vcmp.lt.f32.partialorder %v652, 0.0004427343
        %v654 = vsel %vm653, %v651, %v648
        %v655 = vadd.f32 %v391, 1.0
        %v656 = vlog2.pop %v655
        %v657 = vmul.f32 %v656, 0.6931472
        %v658 = vmul.f32 -0.5, %v391
        %v659 = vadd.f32 %v658, 1.0
        %v660 = vmul.f32 %v659, %v391
        %v661 = vand.u32 2147483647, %v391
        %vm662 = vcmp.lt.f32.partialorder %v661, 0.0004427343
        %v663 = vsel %vm662, %v660, %v657
        %v664 = vadd.f32 %v392, 1.0
        %v665 = vlog2.pop %v664
        %v666 = vmul.f32 %v665, 0.6931472
        %v667 = vmul.f32 -0.5, %v392
        %v668 = vadd.f32 %v667, 1.0
        %v669 = vmul.f32 %v668, %v392
        %v670 = vand.u32 2147483647, %v392
        %vm671 = vcmp.lt.f32.partialorder %v670, 0.0004427343
        %v672 = vsel %vm671, %v669, %v666
        %v673 = vadd.f32 %v393, 1.0
        %v674 = vlog2.pop %v673
        %v675 = vmul.f32 %v674, 0.6931472
        %v676 = vmul.f32 -0.5, %v393
        %v677 = vadd.f32 %v676, 1.0
        %v678 = vmul.f32 %v677, %v393
        %v679 = vand.u32 2147483647, %v393
        %vm680 = vcmp.lt.f32.partialorder %v679, 0.0004427343
        %v681 = vsel %vm680, %v678, %v675
        %v682 = vadd.f32 %v394, 1.0
        %v683 = vlog2.pop %v682
        %v684 = vmul.f32 %v683, 0.6931472
        %v685 = vmul.f32 -0.5, %v394
        %v686 = vadd.f32 %v685, 1.0
        %v687 = vmul.f32 %v686, %v394
        %v688 = vand.u32 2147483647, %v394
        %vm689 = vcmp.lt.f32.partialorder %v688, 0.0004427343
        %v690 = vsel %vm689, %v687, %v684
        %v691 = vadd.f32 %v395, 1.0
        %v692 = vlog2.pop %v691
        %v693 = vmul.f32 %v692, 0.6931472
        %v694 = vmul.f32 -0.5, %v395
        %v695 = vadd.f32 %v694, 1.0
        %v696 = vmul.f32 %v695, %v395
        %v697 = vand.u32 2147483647, %v395
        %vm698 = vcmp.lt.f32.partialorder %v697, 0.0004427343
        %v699 = vsel %vm698, %v696, %v693
        %v700 = vadd.f32 %v396, 1.0
        %v701 = vlog2.pop %v700
        %v702 = vmul.f32 %v701, 0.6931472
        %v703 = vmul.f32 -0.5, %v396
        %v704 = vadd.f32 %v703, 1.0
        %v705 = vmul.f32 %v704, %v396
        %v706 = vand.u32 2147483647, %v396
        %vm707 = vcmp.lt.f32.partialorder %v706, 0.0004427343
        %v708 = vsel %vm707, %v705, %v702
        %v709 = vadd.f32 %v397, 1.0
        %v710 = vlog2.pop %v709
        %v711 = vmul.f32 %v710, 0.6931472
        %v712 = vmul.f32 -0.5, %v397
        %v713 = vadd.f32 %v712, 1.0
        %v714 = vmul.f32 %v713, %v397
        %v715 = vand.u32 2147483647, %v397
        %vm716 = vcmp.lt.f32.partialorder %v715, 0.0004427343
        %v717 = vsel %vm716, %v714, %v711
        %v718 = vadd.f32 %v398, 1.0
        %v719 = vlog2.pop %v718
        %v720 = vmul.f32 %v719, 0.6931472
        %v721 = vmul.f32 -0.5, %v398
        %v722 = vadd.f32 %v721, 1.0
        %v723 = vmul.f32 %v722, %v398
        %v724 = vand.u32 2147483647, %v398
        %vm725 = vcmp.lt.f32.partialorder %v724, 0.0004427343
        %v726 = vsel %vm725, %v723, %v720
        %v727 = vadd.f32 %v399, 1.0
        %v728 = vlog2.pop %v727
        %v729 = vmul.f32 %v728, 0.6931472
        %v730 = vmul.f32 -0.5, %v399
        %v731 = vadd.f32 %v730, 1.0
        %v732 = vmul.f32 %v731, %v399
        %v733 = vand.u32 2147483647, %v399
        %vm734 = vcmp.lt.f32.partialorder %v733, 0.0004427343
        %v735 = vsel %vm734, %v732, %v729
        %v736 = vadd.f32 %v400, 1.0
        %v737 = vlog2.pop %v736
        %v738 = vmul.f32 %v737, 0.6931472
        %v739 = vmul.f32 -0.5, %v400
        %v740 = vadd.f32 %v739, 1.0
        %v741 = vmul.f32 %v740, %v400
        %v742 = vand.u32 2147483647, %v400
        %vm743 = vcmp.lt.f32.partialorder %v742, 0.0004427343
        %v744 = vsel %vm743, %v741, %v738
        %v745 = vadd.f32 %v401, 1.0
        %v746 = vlog2.pop %v745
        %v747 = vmul.f32 %v746, 0.6931472
        %v748 = vmul.f32 -0.5, %v401
        %v749 = vadd.f32 %v748, 1.0
        %v750 = vmul.f32 %v749, %v401
        %v751 = vand.u32 2147483647, %v401
        %vm752 = vcmp.lt.f32.partialorder %v751, 0.0004427343
        %v753 = vsel %vm752, %v750, %v747
        %v754 = vadd.f32 %v402, 1.0
        %v755 = vlog2.pop %v754
        %v756 = vmul.f32 %v755, 0.6931472
        %v757 = vmul.f32 -0.5, %v402
        %v758 = vadd.f32 %v757, 1.0
        %v759 = vmul.f32 %v758, %v402
        %v760 = vand.u32 2147483647, %v402
        %vm761 = vcmp.lt.f32.partialorder %v760, 0.0004427343
        %v762 = vsel %vm761, %v759, %v756
        %v763 = vadd.f32 %v403, 1.0
        %v764 = vlog2.pop %v763
        %v765 = vmul.f32 %v764, 0.6931472
        %v766 = vmul.f32 -0.5, %v403
        %v767 = vadd.f32 %v766, 1.0
        %v768 = vmul.f32 %v767, %v403
        %v769 = vand.u32 2147483647, %v403
        %vm770 = vcmp.lt.f32.partialorder %v769, 0.0004427343
        %v771 = vsel %vm770, %v768, %v765
        %v772 = vadd.f32 %v404, 1.0
        %v773 = vlog2.pop %v772
        %v774 = vmul.f32 %v773, 0.6931472
        %v775 = vmul.f32 -0.5, %v404
        %v776 = vadd.f32 %v775, 1.0
        %v777 = vmul.f32 %v776, %v404
        %v778 = vand.u32 2147483647, %v404
        %vm779 = vcmp.lt.f32.partialorder %v778, 0.0004427343
        %v780 = vsel %vm779, %v777, %v774
        %v781 = vadd.f32 %v405, 1.0
        %v782 = vlog2.pop %v781
        %v783 = vmul.f32 %v782, 0.6931472
        %v784 = vmul.f32 -0.5, %v405
        %v785 = vadd.f32 %v784, 1.0
        %v786 = vmul.f32 %v785, %v405
        %v787 = vand.u32 2147483647, %v405
        %vm788 = vcmp.lt.f32.partialorder %v787, 0.0004427343
        %v789 = vsel %vm788, %v786, %v783
        %v790 = vadd.f32 %v406, 1.0
        %v791 = vlog2.pop %v790
        %v792 = vmul.f32 %v791, 0.6931472
        %v793 = vmul.f32 -0.5, %v406
        %v794 = vadd.f32 %v793, 1.0
        %v795 = vmul.f32 %v794, %v406
        %v796 = vand.u32 2147483647, %v406
        %vm797 = vcmp.lt.f32.partialorder %v796, 0.0004427343
        %v798 = vsel %vm797, %v795, %v792
        %v799 = vadd.f32 %v407, 1.0
        %v800 = vlog2.pop %v799
        %v801 = vmul.f32 %v800, 0.6931472
        %v802 = vmul.f32 -0.5, %v407
        %v803 = vadd.f32 %v802, 1.0
        %v804 = vmul.f32 %v803, %v407
        %v805 = vand.u32 2147483647, %v407
        %vm806 = vcmp.lt.f32.partialorder %v805, 0.0004427343
        %v807 = vsel %vm806, %v804, %v801
        %v808 = vadd.f32 %v408, 1.0
        %v809 = vlog2.pop %v808
        %v810 = vmul.f32 %v809, 0.6931472
        %v811 = vmul.f32 -0.5, %v408
        %v812 = vadd.f32 %v811, 1.0
        %v813 = vmul.f32 %v812, %v408
        %v814 = vand.u32 2147483647, %v408
        %vm815 = vcmp.lt.f32.partialorder %v814, 0.0004427343
        %v816 = vsel %vm815, %v813, %v810
        %v817 = vadd.f32 %v409, 1.0
        %v818 = vlog2.pop %v817
        %v819 = vmul.f32 %v818, 0.6931472
        %v820 = vmul.f32 -0.5, %v409
        %v821 = vadd.f32 %v820, 1.0
        %v822 = vmul.f32 %v821, %v409
        %v823 = vand.u32 2147483647, %v409
        %vm824 = vcmp.lt.f32.partialorder %v823, 0.0004427343
        %v825 = vsel %vm824, %v822, %v819
        %v826 = vadd.f32 %v410, 1.0
        %v827 = vlog2.pop %v826
        %v828 = vmul.f32 %v827, 0.6931472
        %v829 = vmul.f32 -0.5, %v410
        %v830 = vadd.f32 %v829, 1.0
        %v831 = vmul.f32 %v830, %v410
        %v832 = vand.u32 2147483647, %v410
        %vm833 = vcmp.lt.f32.partialorder %v832, 0.0004427343
        %v834 = vsel %vm833, %v831, %v828
        %v835 = vadd.f32 %v411, 1.0
        %v836 = vlog2.pop %v835
        %v837 = vmul.f32 %v836, 0.6931472
        %v838 = vmul.f32 -0.5, %v411
        %v839 = vadd.f32 %v838, 1.0
        %v840 = vmul.f32 %v839, %v411
        %v841 = vand.u32 2147483647, %v411
        %vm842 = vcmp.lt.f32.partialorder %v841, 0.0004427343
        %v843 = vsel %vm842, %v840, %v837
        %v844 = vadd.f32 %v412, 1.0
        %v845 = vlog2.pop %v844
        %v846 = vmul.f32 %v845, 0.6931472
        %v847 = vmul.f32 -0.5, %v412
        %v848 = vadd.f32 %v847, 1.0
        %v849 = vmul.f32 %v848, %v412
        %v850 = vand.u32 2147483647, %v412
        %vm851 = vcmp.lt.f32.partialorder %v850, 0.0004427343
        %v852 = vsel %vm851, %v849, %v846
        %v853 = vadd.f32 %v413, 1.0
        %v854 = vlog2.pop %v853
        %v855 = vmul.f32 %v854, 0.6931472
        %v856 = vmul.f32 -0.5, %v413
        %v857 = vadd.f32 %v856, 1.0
        %v858 = vmul.f32 %v857, %v413
        %v859 = vand.u32 2147483647, %v413
        %vm860 = vcmp.lt.f32.partialorder %v859, 0.0004427343
        %v861 = vsel %vm860, %v858, %v855
        %v862 = vadd.f32 %v414, 1.0
        %v863 = vlog2.pop %v862
        %v864 = vmul.f32 %v863, 0.6931472
        %v865 = vmul.f32 -0.5, %v414
        %v866 = vadd.f32 %v865, 1.0
        %v867 = vmul.f32 %v866, %v414
        %v868 = vand.u32 2147483647, %v414
        %vm869 = vcmp.lt.f32.partialorder %v868, 0.0004427343
        %v870 = vsel %vm869, %v867, %v864
        %v871 = vadd.f32 %v415, 1.0
        %v872 = vlog2.pop %v871
        %v873 = vmul.f32 %v872, 0.6931472
        %v874 = vmul.f32 -0.5, %v415
        %v875 = vadd.f32 %v874, 1.0
        %v876 = vmul.f32 %v875, %v415
        %v877 = vand.u32 2147483647, %v415
        %vm878 = vcmp.lt.f32.partialorder %v877, 0.0004427343
        %v879 = vsel %vm878, %v876, %v873
        %v880 = vadd.f32 %v416, 1.0
        %v881 = vlog2.pop %v880
        %v882 = vmul.f32 %v881, 0.6931472
        %v883 = vmul.f32 -0.5, %v416
        %v884 = vadd.f32 %v883, 1.0
        %v885 = vmul.f32 %v884, %v416
        %v886 = vand.u32 2147483647, %v416
        %vm887 = vcmp.lt.f32.partialorder %v886, 0.0004427343
        %v888 = vsel %vm887, %v885, %v882
        %v889 = vadd.f32 %v417, 1.0
        %v890 = vlog2.pop %v889
        %v891 = vmul.f32 %v890, 0.6931472
        %v892 = vmul.f32 -0.5, %v417
        %v893 = vadd.f32 %v892, 1.0
        %v894 = vmul.f32 %v893, %v417
        %v895 = vand.u32 2147483647, %v417
        %vm896 = vcmp.lt.f32.partialorder %v895, 0.0004427343
        %v897 = vsel %vm896, %v894, %v891
        %v898 = vadd.f32 %v418, 1.0
        %v899 = vlog2.pop %v898
        %v900 = vmul.f32 %v899, 0.6931472
        %v901 = vmul.f32 -0.5, %v418
        %v902 = vadd.f32 %v901, 1.0
        %v903 = vmul.f32 %v902, %v418
        %v904 = vand.u32 2147483647, %v418
        %vm905 = vcmp.lt.f32.partialorder %v904, 0.0004427343
        %v906 = vsel %vm905, %v903, %v900
        %v907 = vadd.f32 %v419, 1.0
        %v908 = vlog2.pop %v907
        %v909 = vmul.f32 %v908, 0.6931472
        %v910 = vmul.f32 -0.5, %v419
        %v911 = vadd.f32 %v910, 1.0
        %v912 = vmul.f32 %v911, %v419
        %v913 = vand.u32 2147483647, %v419
        %vm914 = vcmp.lt.f32.partialorder %v913, 0.0004427343
        %v915 = vsel %vm914, %v912, %v909
        %v916 = vadd.f32 %v420, 1.0
        %v917 = vlog2.pop %v916
        %v918 = vmul.f32 %v917, 0.6931472
        %v919 = vmul.f32 -0.5, %v420
        %v920 = vadd.f32 %v919, 1.0
        %v921 = vmul.f32 %v920, %v420
        %v922 = vand.u32 2147483647, %v420
        %vm923 = vcmp.lt.f32.partialorder %v922, 0.0004427343
        %v924 = vsel %vm923, %v921, %v918
        %v925 = vadd.f32 %v421, 1.0
        %v926 = vlog2.pop %v925
        %v927 = vmul.f32 %v926, 0.6931472
        %v928 = vmul.f32 -0.5, %v421
        %v929 = vadd.f32 %v928, 1.0
        %v930 = vmul.f32 %v929, %v421
        %v931 = vand.u32 2147483647, %v421
        %vm932 = vcmp.lt.f32.partialorder %v931, 0.0004427343
        %v933 = vsel %vm932, %v930, %v927
        %v934 = vadd.f32 %v422, 1.0
        %v935 = vlog2.pop %v934
        %v936 = vmul.f32 %v935, 0.6931472
        %v937 = vmul.f32 -0.5, %v422
        %v938 = vadd.f32 %v937, 1.0
        %v939 = vmul.f32 %v938, %v422
        %v940 = vand.u32 2147483647, %v422
        %vm941 = vcmp.lt.f32.partialorder %v940, 0.0004427343
        %v942 = vsel %vm941, %v939, %v936
        %v943 = vadd.f32 %v423, 1.0
        %v944 = vlog2.pop %v943
        %v945 = vmul.f32 %v944, 0.6931472
        %v946 = vmul.f32 -0.5, %v423
        %v947 = vadd.f32 %v946, 1.0
        %v948 = vmul.f32 %v947, %v423
        %v949 = vand.u32 2147483647, %v423
        %vm950 = vcmp.lt.f32.partialorder %v949, 0.0004427343
        %v951 = vsel %vm950, %v948, %v945
        %v952 = vadd.f32 %v424, 1.0
        %v953 = vlog2.pop %v952
        %v954 = vmul.f32 %v953, 0.6931472
        %v955 = vmul.f32 -0.5, %v424
        %v956 = vadd.f32 %v955, 1.0
        %v957 = vmul.f32 %v956, %v424
        %v958 = vand.u32 2147483647, %v424
        %vm959 = vcmp.lt.f32.partialorder %v958, 0.0004427343
        %v960 = vsel %vm959, %v957, %v954
        %v961 = vadd.f32 %v425, 1.0
        %v962 = vlog2.pop %v961
        %v963 = vmul.f32 %v962, 0.6931472
        %v964 = vmul.f32 -0.5, %v425
        %v965 = vadd.f32 %v964, 1.0
        %v966 = vmul.f32 %v965, %v425
        %v967 = vand.u32 2147483647, %v425
        %vm968 = vcmp.lt.f32.partialorder %v967, 0.0004427343
        %v969 = vsel %vm968, %v966, %v963
        %v970 = vadd.f32 %v426, 1.0
        %v971 = vlog2.pop %v970
        %v972 = vmul.f32 %v971, 0.6931472
        %v973 = vmul.f32 -0.5, %v426
        %v974 = vadd.f32 %v973, 1.0
        %v975 = vmul.f32 %v974, %v426
        %v976 = vand.u32 2147483647, %v426
        %vm977 = vcmp.lt.f32.partialorder %v976, 0.0004427343
        %v978 = vsel %vm977, %v975, %v972
        %v979 = vadd.f32 %v427, 1.0
        %v980 = vlog2.pop %v979
        %v981 = vmul.f32 %v980, 0.6931472
        %v982 = vmul.f32 -0.5, %v427
        %v983 = vadd.f32 %v982, 1.0
        %v984 = vmul.f32 %v983, %v427
        %v985 = vand.u32 2147483647, %v427
        %vm986 = vcmp.lt.f32.partialorder %v985, 0.0004427343
        %v987 = vsel %vm986, %v984, %v981
        %v988 = vadd.f32 %v428, 1.0
        %v989 = vlog2.pop %v988
        %v990 = vmul.f32 %v989, 0.6931472
        %v991 = vmul.f32 -0.5, %v428
        %v992 = vadd.f32 %v991, 1.0
        %v993 = vmul.f32 %v992, %v428
        %v994 = vand.u32 2147483647, %v428
        %vm995 = vcmp.lt.f32.partialorder %v994, 0.0004427343
        %v996 = vsel %vm995, %v993, %v990
        %v997 = vadd.f32 %v429, 1.0
        %v998 = vlog2.pop %v997
        %v999 = vmul.f32 %v998, 0.6931472
        %v1000 = vmul.f32 -0.5, %v429
        %v1001 = vadd.f32 %v1000, 1.0
        %v1002 = vmul.f32 %v1001, %v429
        %v1003 = vand.u32 2147483647, %v429
        %vm1004 = vcmp.lt.f32.partialorder %v1003, 0.0004427343
        %v1005 = vsel %vm1004, %v1002, %v999
        %v1006 = vstv %s301
        %v1007 = vmul.f32 %v1006, %v302
        %v1008 = vmul.f32 %v1006, %v303
        %v1009 = vmul.f32 %v1006, %v304
        %v1010 = vmul.f32 %v1006, %v305
        %v1011 = vmul.f32 %v1006, %v306
        %v1012 = vmul.f32 %v1006, %v307
        %v1013 = vmul.f32 %v1006, %v308
        %v1014 = vmul.f32 %v1006, %v309
        %v1015 = vmul.f32 %v1006, %v310
        %v1016 = vmul.f32 %v1006, %v311
        %v1017 = vmul.f32 %v1006, %v312
        %v1018 = vmul.f32 %v1006, %v313
        %v1019 = vmul.f32 %v1006, %v314
        %v1020 = vmul.f32 %v1006, %v315
        %v1021 = vmul.f32 %v1006, %v316
        %v1022 = vmul.f32 %v1006, %v317
        %v1023 = vmul.f32 %v1006, %v318
        %v1024 = vmul.f32 %v1006, %v319
        %v1025 = vmul.f32 %v1006, %v320
        %v1026 = vmul.f32 %v1006, %v321
        %v1027 = vmul.f32 %v1006, %v322
        %v1028 = vmul.f32 %v1006, %v323
        %v1029 = vmul.f32 %v1006, %v324
        %v1030 = vmul.f32 %v1006, %v325
        %v1031 = vmul.f32 %v1006, %v326
        %v1032 = vmul.f32 %v1006, %v327
        %v1033 = vmul.f32 %v1006, %v328
        %v1034 = vmul.f32 %v1006, %v329
        %v1035 = vmul.f32 %v1006, %v330
        %v1036 = vmul.f32 %v1006, %v331
        %v1037 = vmul.f32 %v1006, %v332
        %v1038 = vmul.f32 %v1006, %v333
        %v1039 = vmul.f32 %v1006, %v334
        %v1040 = vmul.f32 %v1006, %v335
        %v1041 = vmul.f32 %v1006, %v336
        %v1042 = vmul.f32 %v1006, %v337
        %v1043 = vmul.f32 %v1006, %v338
        %v1044 = vmul.f32 %v1006, %v339
        %v1045 = vmul.f32 %v1006, %v340
        %v1046 = vmul.f32 %v1006, %v341
        %v1047 = vmul.f32 %v1006, %v342
        %v1048 = vmul.f32 %v1006, %v343
        %v1049 = vmul.f32 %v1006, %v344
        %v1050 = vmul.f32 %v1006, %v345
        %v1051 = vmul.f32 %v1006, %v346
        %v1052 = vmul.f32 %v1006, %v347
        %v1053 = vmul.f32 %v1006, %v348
        %v1054 = vmul.f32 %v1006, %v349
        %v1055 = vmul.f32 %v1006, %v350
        %v1056 = vmul.f32 %v1006, %v351
        %v1057 = vmul.f32 %v1006, %v352
        %v1058 = vmul.f32 %v1006, %v353
        %v1059 = vmul.f32 %v1006, %v354
        %v1060 = vmul.f32 %v1006, %v355
        %v1061 = vmul.f32 %v1006, %v356
        %v1062 = vmul.f32 %v1006, %v357
        %v1063 = vmul.f32 %v1006, %v358
        %v1064 = vmul.f32 %v1006, %v359
        %v1065 = vmul.f32 %v1006, %v360
        %v1066 = vmul.f32 %v1006, %v361
        %v1067 = vmul.f32 %v1006, %v362
        %v1068 = vmul.f32 %v1006, %v363
        %v1069 = vmul.f32 %v1006, %v364
        %v1070 = vmul.f32 %v1006, %v365
        %v1071 = vstv %s299
        %v1072 = vadd.f32 %v1071, %v1007
        %v1073 = vadd.f32 %v1071, %v1008
        %v1074 = vadd.f32 %v1071, %v1009
        %v1075 = vadd.f32 %v1071, %v1010
        %v1076 = vadd.f32 %v1071, %v1011
        %v1077 = vadd.f32 %v1071, %v1012
        %v1078 = vadd.f32 %v1071, %v1013
        %v1079 = vadd.f32 %v1071, %v1014
        %v1080 = vadd.f32 %v1071, %v1015
        %v1081 = vadd.f32 %v1071, %v1016
        %v1082 = vadd.f32 %v1071, %v1017
        %v1083 = vadd.f32 %v1071, %v1018
        %v1084 = vadd.f32 %v1071, %v1019
        %v1085 = vadd.f32 %v1071, %v1020
        %v1086 = vadd.f32 %v1071, %v1021
        %v1087 = vadd.f32 %v1071, %v1022
        %v1088 = vadd.f32 %v1071, %v1023
        %v1089 = vadd.f32 %v1071, %v1024
        %v1090 = vadd.f32 %v1071, %v1025
        %v1091 = vadd.f32 %v1071, %v1026
        %v1092 = vadd.f32 %v1071, %v1027
        %v1093 = vadd.f32 %v1071, %v1028
        %v1094 = vadd.f32 %v1071, %v1029
        %v1095 = vadd.f32 %v1071, %v1030
        %v1096 = vadd.f32 %v1071, %v1031
        %v1097 = vadd.f32 %v1071, %v1032
        %v1098 = vadd.f32 %v1071, %v1033
        %v1099 = vadd.f32 %v1071, %v1034
        %v1100 = vadd.f32 %v1071, %v1035
        %v1101 = vadd.f32 %v1071, %v1036
        %v1102 = vadd.f32 %v1071, %v1037
        %v1103 = vadd.f32 %v1071, %v1038
        %v1104 = vadd.f32 %v1071, %v1039
        %v1105 = vadd.f32 %v1071, %v1040
        %v1106 = vadd.f32 %v1071, %v1041
        %v1107 = vadd.f32 %v1071, %v1042
        %v1108 = vadd.f32 %v1071, %v1043
        %v1109 = vadd.f32 %v1071, %v1044
        %v1110 = vadd.f32 %v1071, %v1045
        %v1111 = vadd.f32 %v1071, %v1046
        %v1112 = vadd.f32 %v1071, %v1047
        %v1113 = vadd.f32 %v1071, %v1048
        %v1114 = vadd.f32 %v1071, %v1049
        %v1115 = vadd.f32 %v1071, %v1050
        %v1116 = vadd.f32 %v1071, %v1051
        %v1117 = vadd.f32 %v1071, %v1052
        %v1118 = vadd.f32 %v1071, %v1053
        %v1119 = vadd.f32 %v1071, %v1054
        %v1120 = vadd.f32 %v1071, %v1055
        %v1121 = vadd.f32 %v1071, %v1056
        %v1122 = vadd.f32 %v1071, %v1057
        %v1123 = vadd.f32 %v1071, %v1058
        %v1124 = vadd.f32 %v1071, %v1059
        %v1125 = vadd.f32 %v1071, %v1060
        %v1126 = vadd.f32 %v1071, %v1061
        %v1127 = vadd.f32 %v1071, %v1062
        %v1128 = vadd.f32 %v1071, %v1063
        %v1129 = vadd.f32 %v1071, %v1064
        %v1130 = vadd.f32 %v1071, %v1065
        %v1131 = vadd.f32 %v1071, %v1066
        %v1132 = vadd.f32 %v1071, %v1067
        %v1133 = vadd.f32 %v1071, %v1068
        %v1134 = vadd.f32 %v1071, %v1069
        %v1135 = vadd.f32 %v1071, %v1070
        %v1136 = vsub.f32 %v438, %v1072
        %v1137 = vsub.f32 %v447, %v1073
        %v1138 = vsub.f32 %v456, %v1074
        %v1139 = vsub.f32 %v465, %v1075
        %v1140 = vsub.f32 %v474, %v1076
        %v1141 = vsub.f32 %v483, %v1077
        %v1142 = vsub.f32 %v492, %v1078
        %v1143 = vsub.f32 %v501, %v1079
        %v1144 = vsub.f32 %v510, %v1080
        %v1145 = vsub.f32 %v519, %v1081
        %v1146 = vsub.f32 %v528, %v1082
        %v1147 = vsub.f32 %v537, %v1083
        %v1148 = vsub.f32 %v546, %v1084
        %v1149 = vsub.f32 %v555, %v1085
        %v1150 = vsub.f32 %v564, %v1086
        %v1151 = vsub.f32 %v573, %v1087
        %v1152 = vsub.f32 %v582, %v1088
        %v1153 = vsub.f32 %v591, %v1089
        %v1154 = vsub.f32 %v600, %v1090
        %v1155 = vsub.f32 %v609, %v1091
        %v1156 = vsub.f32 %v618, %v1092
        %v1157 = vsub.f32 %v627, %v1093
        %v1158 = vsub.f32 %v636, %v1094
        %v1159 = vsub.f32 %v645, %v1095
        %v1160 = vsub.f32 %v654, %v1096
        %v1161 = vsub.f32 %v663, %v1097
        %v1162 = vsub.f32 %v672, %v1098
        %v1163 = vsub.f32 %v681, %v1099
        %v1164 = vsub.f32 %v690, %v1100
        %v1165 = vsub.f32 %v699, %v1101
        %v1166 = vsub.f32 %v708, %v1102
        %v1167 = vsub.f32 %v717, %v1103
        %v1168 = vsub.f32 %v726, %v1104
        %v1169 = vsub.f32 %v735, %v1105
        %v1170 = vsub.f32 %v744, %v1106
        %v1171 = vsub.f32 %v753, %v1107
        %v1172 = vsub.f32 %v762, %v1108
        %v1173 = vsub.f32 %v771, %v1109
        %v1174 = vsub.f32 %v780, %v1110
        %v1175 = vsub.f32 %v789, %v1111
        %v1176 = vsub.f32 %v798, %v1112
        %v1177 = vsub.f32 %v807, %v1113
        %v1178 = vsub.f32 %v816, %v1114
        %v1179 = vsub.f32 %v825, %v1115
        %v1180 = vsub.f32 %v834, %v1116
        %v1181 = vsub.f32 %v843, %v1117
        %v1182 = vsub.f32 %v852, %v1118
        %v1183 = vsub.f32 %v861, %v1119
        %v1184 = vsub.f32 %v870, %v1120
        %v1185 = vsub.f32 %v879, %v1121
        %v1186 = vsub.f32 %v888, %v1122
        %v1187 = vsub.f32 %v897, %v1123
        %v1188 = vsub.f32 %v906, %v1124
        %v1189 = vsub.f32 %v915, %v1125
        %v1190 = vsub.f32 %v924, %v1126
        %v1191 = vsub.f32 %v933, %v1127
        %v1192 = vsub.f32 %v942, %v1128
        %v1193 = vsub.f32 %v951, %v1129
        %v1194 = vsub.f32 %v960, %v1130
        %v1195 = vsub.f32 %v969, %v1131
        %v1196 = vsub.f32 %v978, %v1132
        %v1197 = vsub.f32 %v987, %v1133
        %v1198 = vsub.f32 %v996, %v1134
        %v1199 = vsub.f32 %v1005, %v1135
        %v1200 = vmul.f32 %v1136, %v1136
        %v1201 = vmul.f32 %v1137, %v1137
        %v1202 = vmul.f32 %v1138, %v1138
        %v1203 = vmul.f32 %v1139, %v1139
        %v1204 = vmul.f32 %v1140, %v1140
        %v1205 = vmul.f32 %v1141, %v1141
        %v1206 = vmul.f32 %v1142, %v1142
        %v1207 = vmul.f32 %v1143, %v1143
        %v1208 = vmul.f32 %v1144, %v1144
        %v1209 = vmul.f32 %v1145, %v1145
        %v1210 = vmul.f32 %v1146, %v1146
        %v1211 = vmul.f32 %v1147, %v1147
        %v1212 = vmul.f32 %v1148, %v1148
        %v1213 = vmul.f32 %v1149, %v1149
        %v1214 = vmul.f32 %v1150, %v1150
        %v1215 = vmul.f32 %v1151, %v1151
        %v1216 = vmul.f32 %v1152, %v1152
        %v1217 = vmul.f32 %v1153, %v1153
        %v1218 = vmul.f32 %v1154, %v1154
        %v1219 = vmul.f32 %v1155, %v1155
        %v1220 = vmul.f32 %v1156, %v1156
        %v1221 = vmul.f32 %v1157, %v1157
        %v1222 = vmul.f32 %v1158, %v1158
        %v1223 = vmul.f32 %v1159, %v1159
        %v1224 = vmul.f32 %v1160, %v1160
        %v1225 = vmul.f32 %v1161, %v1161
        %v1226 = vmul.f32 %v1162, %v1162
        %v1227 = vmul.f32 %v1163, %v1163
        %v1228 = vmul.f32 %v1164, %v1164
        %v1229 = vmul.f32 %v1165, %v1165
        %v1230 = vmul.f32 %v1166, %v1166
        %v1231 = vmul.f32 %v1167, %v1167
        %v1232 = vmul.f32 %v1168, %v1168
        %v1233 = vmul.f32 %v1169, %v1169
        %v1234 = vmul.f32 %v1170, %v1170
        %v1235 = vmul.f32 %v1171, %v1171
        %v1236 = vmul.f32 %v1172, %v1172
        %v1237 = vmul.f32 %v1173, %v1173
        %v1238 = vmul.f32 %v1174, %v1174
        %v1239 = vmul.f32 %v1175, %v1175
        %v1240 = vmul.f32 %v1176, %v1176
        %v1241 = vmul.f32 %v1177, %v1177
        %v1242 = vmul.f32 %v1178, %v1178
        %v1243 = vmul.f32 %v1179, %v1179
        %v1244 = vmul.f32 %v1180, %v1180
        %v1245 = vmul.f32 %v1181, %v1181
        %v1246 = vmul.f32 %v1182, %v1182
        %v1247 = vmul.f32 %v1183, %v1183
        %v1248 = vmul.f32 %v1184, %v1184
        %v1249 = vmul.f32 %v1185, %v1185
        %v1250 = vmul.f32 %v1186, %v1186
        %v1251 = vmul.f32 %v1187, %v1187
        %v1252 = vmul.f32 %v1188, %v1188
        %v1253 = vmul.f32 %v1189, %v1189
        %v1254 = vmul.f32 %v1190, %v1190
        %v1255 = vmul.f32 %v1191, %v1191
        %v1256 = vmul.f32 %v1192, %v1192
        %v1257 = vmul.f32 %v1193, %v1193
        %v1258 = vmul.f32 %v1194, %v1194
        %v1259 = vmul.f32 %v1195, %v1195
        %v1260 = vmul.f32 %v1196, %v1196
        %v1261 = vmul.f32 %v1197, %v1197
        %v1262 = vmul.f32 %v1198, %v1198
        %v1263 = vmul.f32 %v1199, %v1199
        %v1264 = vlaneseq
        %v1265 = vshrl.u32 %v1264, 7
        %v1266 = vadd.s32 %v1265, 8
        %v1267 = vadd.s32 %v1265, 16
        %v1268 = vadd.s32 %v1265, 24
        %v1269 = vadd.s32 %v1265, 32
        %v1270 = vadd.s32 %v1265, 40
        %v1271 = vadd.s32 %v1265, 48
        %v1272 = vadd.s32 %v1265, 56
        %v1273 = vadd.s32 %v1265, 64
        %v1274 = vadd.s32 %v1265, 72
        %v1275 = vadd.s32 %v1265, 80
        %v1276 = vadd.s32 %v1265, 88
        %v1277 = vadd.s32 %v1265, 96
        %v1278 = vadd.s32 %v1265, 104
        %v1279 = vadd.s32 %v1265, 112
        %v1280 = vadd.s32 %v1265, 120
        %v1281 = vadd.s32 %v1265, 128
        %v1282 = vadd.s32 %v1265, 136
        %v1283 = vadd.s32 %v1265, 144
        %v1284 = vadd.s32 %v1265, 152
        %v1285 = vadd.s32 %v1265, 160
        %v1286 = vadd.s32 %v1265, 168
        %v1287 = vadd.s32 %v1265, 176
        %v1288 = vadd.s32 %v1265, 184
        %v1289 = vadd.s32 %v1265, 192
        %v1290 = vadd.s32 %v1265, 200
        %v1291 = vadd.s32 %v1265, 208
        %v1292 = vadd.s32 %v1265, 216
        %v1293 = vadd.s32 %v1265, 224
        %v1294 = vadd.s32 %v1265, 232
        %v1295 = vadd.s32 %v1265, 240
        %v1296 = vadd.s32 %v1265, 248
        %v1297 = vadd.s32 %v1265, 256
        %v1298 = vadd.s32 %v1265, 264
        %v1299 = vadd.s32 %v1265, 272
        %v1300 = vadd.s32 %v1265, 280
        %v1301 = vadd.s32 %v1265, 288
        %v1302 = vadd.s32 %v1265, 296
        %v1303 = vadd.s32 %v1265, 304
        %v1304 = vadd.s32 %v1265, 312
        %v1305 = vadd.s32 %v1265, 320
        %v1306 = vadd.s32 %v1265, 328
        %v1307 = vadd.s32 %v1265, 336
        %v1308 = vadd.s32 %v1265, 344
        %v1309 = vadd.s32 %v1265, 352
        %v1310 = vadd.s32 %v1265, 360
        %v1311 = vadd.s32 %v1265, 368
        %v1312 = vadd.s32 %v1265, 376
        %v1313 = vadd.s32 %v1265, 384
        %v1314 = vadd.s32 %v1265, 392
        %v1315 = vadd.s32 %v1265, 400
        %v1316 = vadd.s32 %v1265, 408
        %v1317 = vadd.s32 %v1265, 416
        %v1318 = vadd.s32 %v1265, 424
        %v1319 = vadd.s32 %v1265, 432
        %v1320 = vadd.s32 %v1265, 440
        %v1321 = vadd.s32 %v1265, 448
        %v1322 = vadd.s32 %v1265, 456
        %v1323 = vadd.s32 %v1265, 464
        %v1324 = vadd.s32 %v1265, 472
        %v1325 = vadd.s32 %v1265, 480
        %v1326 = vadd.s32 %v1265, 488
        %v1327 = vadd.s32 %v1265, 496
        %v1328 = vadd.s32 %v1265, 504
        %v1329 = vlaneseq
        %v1330 = vand.u32 %v1329, 127
        %s1331 = smul.u32 %s22, 65536
        %v1332 = vmul.u32 %v1265, 128
        %v1333 = vmul.u32 %v1266, 128
        %v1334 = vmul.u32 %v1267, 128
        %v1335 = vmul.u32 %v1268, 128
        %v1336 = vmul.u32 %v1269, 128
        %v1337 = vmul.u32 %v1270, 128
        %v1338 = vmul.u32 %v1271, 128
        %v1339 = vmul.u32 %v1272, 128
        %v1340 = vmul.u32 %v1273, 128
        %v1341 = vmul.u32 %v1274, 128
        %v1342 = vmul.u32 %v1275, 128
        %v1343 = vmul.u32 %v1276, 128
        %v1344 = vmul.u32 %v1277, 128
        %v1345 = vmul.u32 %v1278, 128
        %v1346 = vmul.u32 %v1279, 128
        %v1347 = vmul.u32 %v1280, 128
        %v1348 = vmul.u32 %v1281, 128
        %v1349 = vmul.u32 %v1282, 128
        %v1350 = vmul.u32 %v1283, 128
        %v1351 = vmul.u32 %v1284, 128
        %v1352 = vmul.u32 %v1285, 128
        %v1353 = vmul.u32 %v1286, 128
        %v1354 = vmul.u32 %v1287, 128
        %v1355 = vmul.u32 %v1288, 128
        %v1356 = vmul.u32 %v1289, 128
        %v1357 = vmul.u32 %v1290, 128
        %v1358 = vmul.u32 %v1291, 128
        %v1359 = vmul.u32 %v1292, 128
        %v1360 = vmul.u32 %v1293, 128
        %v1361 = vmul.u32 %v1294, 128
        %v1362 = vmul.u32 %v1295, 128
        %v1363 = vmul.u32 %v1296, 128
        %v1364 = vmul.u32 %v1297, 128
        %v1365 = vmul.u32 %v1298, 128
        %v1366 = vmul.u32 %v1299, 128
        %v1367 = vmul.u32 %v1300, 128
        %v1368 = vmul.u32 %v1301, 128
        %v1369 = vmul.u32 %v1302, 128
        %v1370 = vmul.u32 %v1303, 128
        %v1371 = vmul.u32 %v1304, 128
        %v1372 = vmul.u32 %v1305, 128
        %v1373 = vmul.u32 %v1306, 128
        %v1374 = vmul.u32 %v1307, 128
        %v1375 = vmul.u32 %v1308, 128
        %v1376 = vmul.u32 %v1309, 128
        %v1377 = vmul.u32 %v1310, 128
        %v1378 = vmul.u32 %v1311, 128
        %v1379 = vmul.u32 %v1312, 128
        %v1380 = vmul.u32 %v1313, 128
        %v1381 = vmul.u32 %v1314, 128
        %v1382 = vmul.u32 %v1315, 128
        %v1383 = vmul.u32 %v1316, 128
        %v1384 = vmul.u32 %v1317, 128
        %v1385 = vmul.u32 %v1318, 128
        %v1386 = vmul.u32 %v1319, 128
        %v1387 = vmul.u32 %v1320, 128
        %v1388 = vmul.u32 %v1321, 128
        %v1389 = vmul.u32 %v1322, 128
        %v1390 = vmul.u32 %v1323, 128
        %v1391 = vmul.u32 %v1324, 128
        %v1392 = vmul.u32 %v1325, 128
        %v1393 = vmul.u32 %v1326, 128
        %v1394 = vmul.u32 %v1327, 128
        %v1395 = vmul.u32 %v1328, 128
        %v1396 = vstv %s1331
        %v1397 = vadd.s32 %v1396, %v1332
        %v1398 = vadd.s32 %v1396, %v1333
        %v1399 = vadd.s32 %v1396, %v1334
        %v1400 = vadd.s32 %v1396, %v1335
        %v1401 = vadd.s32 %v1396, %v1336
        %v1402 = vadd.s32 %v1396, %v1337
        %v1403 = vadd.s32 %v1396, %v1338
        %v1404 = vadd.s32 %v1396, %v1339
        %v1405 = vadd.s32 %v1396, %v1340
        %v1406 = vadd.s32 %v1396, %v1341
        %v1407 = vadd.s32 %v1396, %v1342
        %v1408 = vadd.s32 %v1396, %v1343
        %v1409 = vadd.s32 %v1396, %v1344
        %v1410 = vadd.s32 %v1396, %v1345
        %v1411 = vadd.s32 %v1396, %v1346
        %v1412 = vadd.s32 %v1396, %v1347
        %v1413 = vadd.s32 %v1396, %v1348
        %v1414 = vadd.s32 %v1396, %v1349
        %v1415 = vadd.s32 %v1396, %v1350
        %v1416 = vadd.s32 %v1396, %v1351
        %v1417 = vadd.s32 %v1396, %v1352
        %v1418 = vadd.s32 %v1396, %v1353
        %v1419 = vadd.s32 %v1396, %v1354
        %v1420 = vadd.s32 %v1396, %v1355
        %v1421 = vadd.s32 %v1396, %v1356
        %v1422 = vadd.s32 %v1396, %v1357
        %v1423 = vadd.s32 %v1396, %v1358
        %v1424 = vadd.s32 %v1396, %v1359
        %v1425 = vadd.s32 %v1396, %v1360
        %v1426 = vadd.s32 %v1396, %v1361
        %v1427 = vadd.s32 %v1396, %v1362
        %v1428 = vadd.s32 %v1396, %v1363
        %v1429 = vadd.s32 %v1396, %v1364
        %v1430 = vadd.s32 %v1396, %v1365
        %v1431 = vadd.s32 %v1396, %v1366
        %v1432 = vadd.s32 %v1396, %v1367
        %v1433 = vadd.s32 %v1396, %v1368
        %v1434 = vadd.s32 %v1396, %v1369
        %v1435 = vadd.s32 %v1396, %v1370
        %v1436 = vadd.s32 %v1396, %v1371
        %v1437 = vadd.s32 %v1396, %v1372
        %v1438 = vadd.s32 %v1396, %v1373
        %v1439 = vadd.s32 %v1396, %v1374
        %v1440 = vadd.s32 %v1396, %v1375
        %v1441 = vadd.s32 %v1396, %v1376
        %v1442 = vadd.s32 %v1396, %v1377
        %v1443 = vadd.s32 %v1396, %v1378
        %v1444 = vadd.s32 %v1396, %v1379
        %v1445 = vadd.s32 %v1396, %v1380
        %v1446 = vadd.s32 %v1396, %v1381
        %v1447 = vadd.s32 %v1396, %v1382
        %v1448 = vadd.s32 %v1396, %v1383
        %v1449 = vadd.s32 %v1396, %v1384
        %v1450 = vadd.s32 %v1396, %v1385
        %v1451 = vadd.s32 %v1396, %v1386
        %v1452 = vadd.s32 %v1396, %v1387
        %v1453 = vadd.s32 %v1396, %v1388
        %v1454 = vadd.s32 %v1396, %v1389
        %v1455 = vadd.s32 %v1396, %v1390
        %v1456 = vadd.s32 %v1396, %v1391
        %v1457 = vadd.s32 %v1396, %v1392
        %v1458 = vadd.s32 %v1396, %v1393
        %v1459 = vadd.s32 %v1396, %v1394
        %v1460 = vadd.s32 %v1396, %v1395
        %v1461 = vadd.s32 %v1397, %v1330
        %v1462 = vadd.s32 %v1398, %v1330
        %v1463 = vadd.s32 %v1399, %v1330
        %v1464 = vadd.s32 %v1400, %v1330
        %v1465 = vadd.s32 %v1401, %v1330
        %v1466 = vadd.s32 %v1402, %v1330
        %v1467 = vadd.s32 %v1403, %v1330
        %v1468 = vadd.s32 %v1404, %v1330
        %v1469 = vadd.s32 %v1405, %v1330
        %v1470 = vadd.s32 %v1406, %v1330
        %v1471 = vadd.s32 %v1407, %v1330
        %v1472 = vadd.s32 %v1408, %v1330
        %v1473 = vadd.s32 %v1409, %v1330
        %v1474 = vadd.s32 %v1410, %v1330
        %v1475 = vadd.s32 %v1411, %v1330
        %v1476 = vadd.s32 %v1412, %v1330
        %v1477 = vadd.s32 %v1413, %v1330
        %v1478 = vadd.s32 %v1414, %v1330
        %v1479 = vadd.s32 %v1415, %v1330
        %v1480 = vadd.s32 %v1416, %v1330
        %v1481 = vadd.s32 %v1417, %v1330
        %v1482 = vadd.s32 %v1418, %v1330
        %v1483 = vadd.s32 %v1419, %v1330
        %v1484 = vadd.s32 %v1420, %v1330
        %v1485 = vadd.s32 %v1421, %v1330
        %v1486 = vadd.s32 %v1422, %v1330
        %v1487 = vadd.s32 %v1423, %v1330
        %v1488 = vadd.s32 %v1424, %v1330
        %v1489 = vadd.s32 %v1425, %v1330
        %v1490 = vadd.s32 %v1426, %v1330
        %v1491 = vadd.s32 %v1427, %v1330
        %v1492 = vadd.s32 %v1428, %v1330
        %v1493 = vadd.s32 %v1429, %v1330
        %v1494 = vadd.s32 %v1430, %v1330
        %v1495 = vadd.s32 %v1431, %v1330
        %v1496 = vadd.s32 %v1432, %v1330
        %v1497 = vadd.s32 %v1433, %v1330
        %v1498 = vadd.s32 %v1434, %v1330
        %v1499 = vadd.s32 %v1435, %v1330
        %v1500 = vadd.s32 %v1436, %v1330
        %v1501 = vadd.s32 %v1437, %v1330
        %v1502 = vadd.s32 %v1438, %v1330
        %v1503 = vadd.s32 %v1439, %v1330
        %v1504 = vadd.s32 %v1440, %v1330
        %v1505 = vadd.s32 %v1441, %v1330
        %v1506 = vadd.s32 %v1442, %v1330
        %v1507 = vadd.s32 %v1443, %v1330
        %v1508 = vadd.s32 %v1444, %v1330
        %v1509 = vadd.s32 %v1445, %v1330
        %v1510 = vadd.s32 %v1446, %v1330
        %v1511 = vadd.s32 %v1447, %v1330
        %v1512 = vadd.s32 %v1448, %v1330
        %v1513 = vadd.s32 %v1449, %v1330
        %v1514 = vadd.s32 %v1450, %v1330
        %v1515 = vadd.s32 %v1451, %v1330
        %v1516 = vadd.s32 %v1452, %v1330
        %v1517 = vadd.s32 %v1453, %v1330
        %v1518 = vadd.s32 %v1454, %v1330
        %v1519 = vadd.s32 %v1455, %v1330
        %v1520 = vadd.s32 %v1456, %v1330
        %v1521 = vadd.s32 %v1457, %v1330
        %v1522 = vadd.s32 %v1458, %v1330
        %v1523 = vadd.s32 %v1459, %v1330
        %v1524 = vadd.s32 %v1460, %v1330
        %vm1525 = vcmp.lt.s32.totalorder %v1461, 70000
        %vm1526 = vcmp.lt.s32.totalorder %v1462, 70000
        %vm1527 = vcmp.lt.s32.totalorder %v1463, 70000
        %vm1528 = vcmp.lt.s32.totalorder %v1464, 70000
        %vm1529 = vcmp.lt.s32.totalorder %v1465, 70000
        %vm1530 = vcmp.lt.s32.totalorder %v1466, 70000
        %vm1531 = vcmp.lt.s32.totalorder %v1467, 70000
        %vm1532 = vcmp.lt.s32.totalorder %v1468, 70000
        %vm1533 = vcmp.lt.s32.totalorder %v1469, 70000
        %vm1534 = vcmp.lt.s32.totalorder %v1470, 70000
        %vm1535 = vcmp.lt.s32.totalorder %v1471, 70000
        %vm1536 = vcmp.lt.s32.totalorder %v1472, 70000
        %vm1537 = vcmp.lt.s32.totalorder %v1473, 70000
        %vm1538 = vcmp.lt.s32.totalorder %v1474, 70000
        %vm1539 = vcmp.lt.s32.totalorder %v1475, 70000
        %vm1540 = vcmp.lt.s32.totalorder %v1476, 70000
        %vm1541 = vcmp.lt.s32.totalorder %v1477, 70000
        %vm1542 = vcmp.lt.s32.totalorder %v1478, 70000
        %vm1543 = vcmp.lt.s32.totalorder %v1479, 70000
        %vm1544 = vcmp.lt.s32.totalorder %v1480, 70000
        %vm1545 = vcmp.lt.s32.totalorder %v1481, 70000
        %vm1546 = vcmp.lt.s32.totalorder %v1482, 70000
        %vm1547 = vcmp.lt.s32.totalorder %v1483, 70000
        %vm1548 = vcmp.lt.s32.totalorder %v1484, 70000
        %vm1549 = vcmp.lt.s32.totalorder %v1485, 70000
        %vm1550 = vcmp.lt.s32.totalorder %v1486, 70000
        %vm1551 = vcmp.lt.s32.totalorder %v1487, 70000
        %vm1552 = vcmp.lt.s32.totalorder %v1488, 70000
        %vm1553 = vcmp.lt.s32.totalorder %v1489, 70000
        %vm1554 = vcmp.lt.s32.totalorder %v1490, 70000
        %vm1555 = vcmp.lt.s32.totalorder %v1491, 70000
        %vm1556 = vcmp.lt.s32.totalorder %v1492, 70000
        %vm1557 = vcmp.lt.s32.totalorder %v1493, 70000
        %vm1558 = vcmp.lt.s32.totalorder %v1494, 70000
        %vm1559 = vcmp.lt.s32.totalorder %v1495, 70000
        %vm1560 = vcmp.lt.s32.totalorder %v1496, 70000
        %vm1561 = vcmp.lt.s32.totalorder %v1497, 70000
        %vm1562 = vcmp.lt.s32.totalorder %v1498, 70000
        %vm1563 = vcmp.lt.s32.totalorder %v1499, 70000
        %vm1564 = vcmp.lt.s32.totalorder %v1500, 70000
        %vm1565 = vcmp.lt.s32.totalorder %v1501, 70000
        %vm1566 = vcmp.lt.s32.totalorder %v1502, 70000
        %vm1567 = vcmp.lt.s32.totalorder %v1503, 70000
        %vm1568 = vcmp.lt.s32.totalorder %v1504, 70000
        %vm1569 = vcmp.lt.s32.totalorder %v1505, 70000
        %vm1570 = vcmp.lt.s32.totalorder %v1506, 70000
        %vm1571 = vcmp.lt.s32.totalorder %v1507, 70000
        %vm1572 = vcmp.lt.s32.totalorder %v1508, 70000
        %vm1573 = vcmp.lt.s32.totalorder %v1509, 70000
        %vm1574 = vcmp.lt.s32.totalorder %v1510, 70000
        %vm1575 = vcmp.lt.s32.totalorder %v1511, 70000
        %vm1576 = vcmp.lt.s32.totalorder %v1512, 70000
        %vm1577 = vcmp.lt.s32.totalorder %v1513, 70000
        %vm1578 = vcmp.lt.s32.totalorder %v1514, 70000
        %vm1579 = vcmp.lt.s32.totalorder %v1515, 70000
        %vm1580 = vcmp.lt.s32.totalorder %v1516, 70000
        %vm1581 = vcmp.lt.s32.totalorder %v1517, 70000
        %vm1582 = vcmp.lt.s32.totalorder %v1518, 70000
        %vm1583 = vcmp.lt.s32.totalorder %v1519, 70000
        %vm1584 = vcmp.lt.s32.totalorder %v1520, 70000
        %vm1585 = vcmp.lt.s32.totalorder %v1521, 70000
        %vm1586 = vcmp.lt.s32.totalorder %v1522, 70000
        %vm1587 = vcmp.lt.s32.totalorder %v1523, 70000
        %vm1588 = vcmp.lt.s32.totalorder %v1524, 70000
        %v1589 = vsel %vm1525, %v1200, 0.0
        %v1590 = vsel %vm1526, %v1201, 0.0
        %v1591 = vsel %vm1527, %v1202, 0.0
        %v1592 = vsel %vm1528, %v1203, 0.0
        %v1593 = vsel %vm1529, %v1204, 0.0
        %v1594 = vsel %vm1530, %v1205, 0.0
        %v1595 = vsel %vm1531, %v1206, 0.0
        %v1596 = vsel %vm1532, %v1207, 0.0
        %v1597 = vsel %vm1533, %v1208, 0.0
        %v1598 = vsel %vm1534, %v1209, 0.0
        %v1599 = vsel %vm1535, %v1210, 0.0
        %v1600 = vsel %vm1536, %v1211, 0.0
        %v1601 = vsel %vm1537, %v1212, 0.0
        %v1602 = vsel %vm1538, %v1213, 0.0
        %v1603 = vsel %vm1539, %v1214, 0.0
        %v1604 = vsel %vm1540, %v1215, 0.0
        %v1605 = vsel %vm1541, %v1216, 0.0
        %v1606 = vsel %vm1542, %v1217, 0.0
        %v1607 = vsel %vm1543, %v1218, 0.0
        %v1608 = vsel %vm1544, %v1219, 0.0
        %v1609 = vsel %vm1545, %v1220, 0.0
        %v1610 = vsel %vm1546, %v1221, 0.0
        %v1611 = vsel %vm1547, %v1222, 0.0
        %v1612 = vsel %vm1548, %v1223, 0.0
        %v1613 = vsel %vm1549, %v1224, 0.0
        %v1614 = vsel %vm1550, %v1225, 0.0
        %v1615 = vsel %vm1551, %v1226, 0.0
        %v1616 = vsel %vm1552, %v1227, 0.0
        %v1617 = vsel %vm1553, %v1228, 0.0
        %v1618 = vsel %vm1554, %v1229, 0.0
        %v1619 = vsel %vm1555, %v1230, 0.0
        %v1620 = vsel %vm1556, %v1231, 0.0
        %v1621 = vsel %vm1557, %v1232, 0.0
        %v1622 = vsel %vm1558, %v1233, 0.0
        %v1623 = vsel %vm1559, %v1234, 0.0
        %v1624 = vsel %vm1560, %v1235, 0.0
        %v1625 = vsel %vm1561, %v1236, 0.0
        %v1626 = vsel %vm1562, %v1237, 0.0
        %v1627 = vsel %vm1563, %v1238, 0.0
        %v1628 = vsel %vm1564, %v1239, 0.0
        %v1629 = vsel %vm1565, %v1240, 0.0
        %v1630 = vsel %vm1566, %v1241, 0.0
        %v1631 = vsel %vm1567, %v1242, 0.0
        %v1632 = vsel %vm1568, %v1243, 0.0
        %v1633 = vsel %vm1569, %v1244, 0.0
        %v1634 = vsel %vm1570, %v1245, 0.0
        %v1635 = vsel %vm1571, %v1246, 0.0
        %v1636 = vsel %vm1572, %v1247, 0.0
        %v1637 = vsel %vm1573, %v1248, 0.0
        %v1638 = vsel %vm1574, %v1249, 0.0
        %v1639 = vsel %vm1575, %v1250, 0.0
        %v1640 = vsel %vm1576, %v1251, 0.0
        %v1641 = vsel %vm1577, %v1252, 0.0
        %v1642 = vsel %vm1578, %v1253, 0.0
        %v1643 = vsel %vm1579, %v1254, 0.0
        %v1644 = vsel %vm1580, %v1255, 0.0
        %v1645 = vsel %vm1581, %v1256, 0.0
        %v1646 = vsel %vm1582, %v1257, 0.0
        %v1647 = vsel %vm1583, %v1258, 0.0
        %v1648 = vsel %vm1584, %v1259, 0.0
        %v1649 = vsel %vm1585, %v1260, 0.0
        %v1650 = vsel %vm1586, %v1261, 0.0
        %v1651 = vsel %vm1587, %v1262, 0.0
        %v1652 = vsel %vm1588, %v1263, 0.0
        %v1653 = vld [vmem:[#allocation2] sm:$0xff]
        %v1654 = vld [vmem:[#allocation2 + $0x8] sm:$0xff]
        %v1655 = vld [vmem:[#allocation2 + $0x10] sm:$0xff]
        %v1656 = vld [vmem:[#allocation2 + $0x18] sm:$0xff]
        %v1657 = vld [vmem:[#allocation2 + $0x20] sm:$0xff]
        %v1658 = vld [vmem:[#allocation2 + $0x28] sm:$0xff]
        %v1659 = vld [vmem:[#allocation2 + $0x30] sm:$0xff]
        %v1660 = vld [vmem:[#allocation2 + $0x38] sm:$0xff]
        %v1661 = vld [vmem:[#allocation2 + $0x40] sm:$0xff]
        %v1662 = vld [vmem:[#allocation2 + $0x48] sm:$0xff]
        %v1663 = vld [vmem:[#allocation2 + $0x50] sm:$0xff]
        %v1664 = vld [vmem:[#allocation2 + $0x58] sm:$0xff]
        %v1665 = vld [vmem:[#allocation2 + $0x60] sm:$0xff]
        %v1666 = vld [vmem:[#allocation2 + $0x68] sm:$0xff]
        %v1667 = vld [vmem:[#allocation2 + $0x70] sm:$0xff]
        %v1668 = vld [vmem:[#allocation2 + $0x78] sm:$0xff]
        %v1669 = vld [vmem:[#allocation2 + $0x80] sm:$0xff]
        %v1670 = vld [vmem:[#allocation2 + $0x88] sm:$0xff]
        %v1671 = vld [vmem:[#allocation2 + $0x90] sm:$0xff]
        %v1672 = vld [vmem:[#allocation2 + $0x98] sm:$0xff]
        %v1673 = vld [vmem:[#allocation2 + $0xa0] sm:$0xff]
        %v1674 = vld [vmem:[#allocation2 + $0xa8] sm:$0xff]
        %v1675 = vld [vmem:[#allocation2 + $0xb0] sm:$0xff]
        %v1676 = vld [vmem:[#allocation2 + $0xb8] sm:$0xff]
        %v1677 = vld [vmem:[#allocation2 + $0xc0] sm:$0xff]
        %v1678 = vld [vmem:[#allocation2 + $0xc8] sm:$0xff]
        %v1679 = vld [vmem:[#allocation2 + $0xd0] sm:$0xff]
        %v1680 = vld [vmem:[#allocation2 + $0xd8] sm:$0xff]
        %v1681 = vld [vmem:[#allocation2 + $0xe0] sm:$0xff]
        %v1682 = vld [vmem:[#allocation2 + $0xe8] sm:$0xff]
        %v1683 = vld [vmem:[#allocation2 + $0xf0] sm:$0xff]
        %v1684 = vld [vmem:[#allocation2 + $0xf8] sm:$0xff]
        %v1685 = vld [vmem:[#allocation2 + $0x100] sm:$0xff]
        %v1686 = vld [vmem:[#allocation2 + $0x108] sm:$0xff]
        %v1687 = vld [vmem:[#allocation2 + $0x110] sm:$0xff]
        %v1688 = vld [vmem:[#allocation2 + $0x118] sm:$0xff]
        %v1689 = vld [vmem:[#allocation2 + $0x120] sm:$0xff]
        %v1690 = vld [vmem:[#allocation2 + $0x128] sm:$0xff]
        %v1691 = vld [vmem:[#allocation2 + $0x130] sm:$0xff]
        %v1692 = vld [vmem:[#allocation2 + $0x138] sm:$0xff]
        %v1693 = vld [vmem:[#allocation2 + $0x140] sm:$0xff]
        %v1694 = vld [vmem:[#allocation2 + $0x148] sm:$0xff]
        %v1695 = vld [vmem:[#allocation2 + $0x150] sm:$0xff]
        %v1696 = vld [vmem:[#allocation2 + $0x158] sm:$0xff]
        %v1697 = vld [vmem:[#allocation2 + $0x160] sm:$0xff]
        %v1698 = vld [vmem:[#allocation2 + $0x168] sm:$0xff]
        %v1699 = vld [vmem:[#allocation2 + $0x170] sm:$0xff]
        %v1700 = vld [vmem:[#allocation2 + $0x178] sm:$0xff]
        %v1701 = vld [vmem:[#allocation2 + $0x180] sm:$0xff]
        %v1702 = vld [vmem:[#allocation2 + $0x188] sm:$0xff]
        %v1703 = vld [vmem:[#allocation2 + $0x190] sm:$0xff]
        %v1704 = vld [vmem:[#allocation2 + $0x198] sm:$0xff]
        %v1705 = vld [vmem:[#allocation2 + $0x1a0] sm:$0xff]
        %v1706 = vld [vmem:[#allocation2 + $0x1a8] sm:$0xff]
        %v1707 = vld [vmem:[#allocation2 + $0x1b0] sm:$0xff]
        %v1708 = vld [vmem:[#allocation2 + $0x1b8] sm:$0xff]
        %v1709 = vld [vmem:[#allocation2 + $0x1c0] sm:$0xff]
        %v1710 = vld [vmem:[#allocation2 + $0x1c8] sm:$0xff]
        %v1711 = vld [vmem:[#allocation2 + $0x1d0] sm:$0xff]
        %v1712 = vld [vmem:[#allocation2 + $0x1d8] sm:$0xff]
        %v1713 = vld [vmem:[#allocation2 + $0x1e0] sm:$0xff]
        %v1714 = vld [vmem:[#allocation2 + $0x1e8] sm:$0xff]
        %v1715 = vld [vmem:[#allocation2 + $0x1f0] sm:$0xff]
        %v1716 = vld [vmem:[#allocation2 + $0x1f8] sm:$0xff]
        %v1717 = vadd.f32 %v1653, %v1589
        %v1718 = vadd.f32 %v1654, %v1590
        %v1719 = vadd.f32 %v1655, %v1591
        %v1720 = vadd.f32 %v1656, %v1592
        %v1721 = vadd.f32 %v1657, %v1593
        %v1722 = vadd.f32 %v1658, %v1594
        %v1723 = vadd.f32 %v1659, %v1595
        %v1724 = vadd.f32 %v1660, %v1596
        %v1725 = vadd.f32 %v1661, %v1597
        %v1726 = vadd.f32 %v1662, %v1598
        %v1727 = vadd.f32 %v1663, %v1599
        %v1728 = vadd.f32 %v1664, %v1600
        %v1729 = vadd.f32 %v1665, %v1601
        %v1730 = vadd.f32 %v1666, %v1602
        %v1731 = vadd.f32 %v1667, %v1603
        %v1732 = vadd.f32 %v1668, %v1604
        %v1733 = vadd.f32 %v1669, %v1605
        %v1734 = vadd.f32 %v1670, %v1606
        %v1735 = vadd.f32 %v1671, %v1607
        %v1736 = vadd.f32 %v1672, %v1608
        %v1737 = vadd.f32 %v1673, %v1609
        %v1738 = vadd.f32 %v1674, %v1610
        %v1739 = vadd.f32 %v1675, %v1611
        %v1740 = vadd.f32 %v1676, %v1612
        %v1741 = vadd.f32 %v1677, %v1613
        %v1742 = vadd.f32 %v1678, %v1614
        %v1743 = vadd.f32 %v1679, %v1615
        %v1744 = vadd.f32 %v1680, %v1616
        %v1745 = vadd.f32 %v1681, %v1617
        %v1746 = vadd.f32 %v1682, %v1618
        %v1747 = vadd.f32 %v1683, %v1619
        %v1748 = vadd.f32 %v1684, %v1620
        %v1749 = vadd.f32 %v1685, %v1621
        %v1750 = vadd.f32 %v1686, %v1622
        %v1751 = vadd.f32 %v1687, %v1623
        %v1752 = vadd.f32 %v1688, %v1624
        %v1753 = vadd.f32 %v1689, %v1625
        %v1754 = vadd.f32 %v1690, %v1626
        %v1755 = vadd.f32 %v1691, %v1627
        %v1756 = vadd.f32 %v1692, %v1628
        %v1757 = vadd.f32 %v1693, %v1629
        %v1758 = vadd.f32 %v1694, %v1630
        %v1759 = vadd.f32 %v1695, %v1631
        %v1760 = vadd.f32 %v1696, %v1632
        %v1761 = vadd.f32 %v1697, %v1633
        %v1762 = vadd.f32 %v1698, %v1634
        %v1763 = vadd.f32 %v1699, %v1635
        %v1764 = vadd.f32 %v1700, %v1636
        %v1765 = vadd.f32 %v1701, %v1637
        %v1766 = vadd.f32 %v1702, %v1638
        %v1767 = vadd.f32 %v1703, %v1639
        %v1768 = vadd.f32 %v1704, %v1640
        %v1769 = vadd.f32 %v1705, %v1641
        %v1770 = vadd.f32 %v1706, %v1642
        %v1771 = vadd.f32 %v1707, %v1643
        %v1772 = vadd.f32 %v1708, %v1644
        %v1773 = vadd.f32 %v1709, %v1645
        %v1774 = vadd.f32 %v1710, %v1646
        %v1775 = vadd.f32 %v1711, %v1647
        %v1776 = vadd.f32 %v1712, %v1648
        %v1777 = vadd.f32 %v1713, %v1649
        %v1778 = vadd.f32 %v1714, %v1650
        %v1779 = vadd.f32 %v1715, %v1651
        %v1780 = vadd.f32 %v1716, %v1652
        %1781 = vst [vmem:[#allocation2] sm:$0xff] %v1717
        %1782 = vst [vmem:[#allocation2 + $0x8] sm:$0xff] %v1718
        %1783 = vst [vmem:[#allocation2 + $0x10] sm:$0xff] %v1719
        %1784 = vst [vmem:[#allocation2 + $0x18] sm:$0xff] %v1720
        %1785 = vst [vmem:[#allocation2 + $0x20] sm:$0xff] %v1721
        %1786 = vst [vmem:[#allocation2 + $0x28] sm:$0xff] %v1722
        %1787 = vst [vmem:[#allocation2 + $0x30] sm:$0xff] %v1723
        %1788 = vst [vmem:[#allocation2 + $0x38] sm:$0xff] %v1724
        %1789 = vst [vmem:[#allocation2 + $0x40] sm:$0xff] %v1725
        %1790 = vst [vmem:[#allocation2 + $0x48] sm:$0xff] %v1726
        %1791 = vst [vmem:[#allocation2 + $0x50] sm:$0xff] %v1727
        %1792 = vst [vmem:[#allocation2 + $0x58] sm:$0xff] %v1728
        %1793 = vst [vmem:[#allocation2 + $0x60] sm:$0xff] %v1729
        %1794 = vst [vmem:[#allocation2 + $0x68] sm:$0xff] %v1730
        %1795 = vst [vmem:[#allocation2 + $0x70] sm:$0xff] %v1731
        %1796 = vst [vmem:[#allocation2 + $0x78] sm:$0xff] %v1732
        %1797 = vst [vmem:[#allocation2 + $0x80] sm:$0xff] %v1733
        %1798 = vst [vmem:[#allocation2 + $0x88] sm:$0xff] %v1734
        %1799 = vst [vmem:[#allocation2 + $0x90] sm:$0xff] %v1735
        %1800 = vst [vmem:[#allocation2 + $0x98] sm:$0xff] %v1736
        %1801 = vst [vmem:[#allocation2 + $0xa0] sm:$0xff] %v1737
        %1802 = vst [vmem:[#allocation2 + $0xa8] sm:$0xff] %v1738
        %1803 = vst [vmem:[#allocation2 + $0xb0] sm:$0xff] %v1739
        %1804 = vst [vmem:[#allocation2 + $0xb8] sm:$0xff] %v1740
        %1805 = vst [vmem:[#allocation2 + $0xc0] sm:$0xff] %v1741
        %1806 = vst [vmem:[#allocation2 + $0xc8] sm:$0xff] %v1742
        %1807 = vst [vmem:[#allocation2 + $0xd0] sm:$0xff] %v1743
        %1808 = vst [vmem:[#allocation2 + $0xd8] sm:$0xff] %v1744
        %1809 = vst [vmem:[#allocation2 + $0xe0] sm:$0xff] %v1745
        %1810 = vst [vmem:[#allocation2 + $0xe8] sm:$0xff] %v1746
        %1811 = vst [vmem:[#allocation2 + $0xf0] sm:$0xff] %v1747
        %1812 = vst [vmem:[#allocation2 + $0xf8] sm:$0xff] %v1748
        %1813 = vst [vmem:[#allocation2 + $0x100] sm:$0xff] %v1749
        %1814 = vst [vmem:[#allocation2 + $0x108] sm:$0xff] %v1750
        %1815 = vst [vmem:[#allocation2 + $0x110] sm:$0xff] %v1751
        %1816 = vst [vmem:[#allocation2 + $0x118] sm:$0xff] %v1752
        %1817 = vst [vmem:[#allocation2 + $0x120] sm:$0xff] %v1753
        %1818 = vst [vmem:[#allocation2 + $0x128] sm:$0xff] %v1754
        %1819 = vst [vmem:[#allocation2 + $0x130] sm:$0xff] %v1755
        %1820 = vst [vmem:[#allocation2 + $0x138] sm:$0xff] %v1756
        %1821 = vst [vmem:[#allocation2 + $0x140] sm:$0xff] %v1757
        %1822 = vst [vmem:[#allocation2 + $0x148] sm:$0xff] %v1758
        %1823 = vst [vmem:[#allocation2 + $0x150] sm:$0xff] %v1759
        %1824 = vst [vmem:[#allocation2 + $0x158] sm:$0xff] %v1760
        %1825 = vst [vmem:[#allocation2 + $0x160] sm:$0xff] %v1761
        %1826 = vst [vmem:[#allocation2 + $0x168] sm:$0xff] %v1762
        %1827 = vst [vmem:[#allocation2 + $0x170] sm:$0xff] %v1763
        %1828 = vst [vmem:[#allocation2 + $0x178] sm:$0xff] %v1764
        %1829 = vst [vmem:[#allocation2 + $0x180] sm:$0xff] %v1765
        %1830 = vst [vmem:[#allocation2 + $0x188] sm:$0xff] %v1766
        %1831 = vst [vmem:[#allocation2 + $0x190] sm:$0xff] %v1767
        %1832 = vst [vmem:[#allocation2 + $0x198] sm:$0xff] %v1768
        %1833 = vst [vmem:[#allocation2 + $0x1a0] sm:$0xff] %v1769
        %1834 = vst [vmem:[#allocation2 + $0x1a8] sm:$0xff] %v1770
        %1835 = vst [vmem:[#allocation2 + $0x1b0] sm:$0xff] %v1771
        %1836 = vst [vmem:[#allocation2 + $0x1b8] sm:$0xff] %v1772
        %1837 = vst [vmem:[#allocation2 + $0x1c0] sm:$0xff] %v1773
        %1838 = vst [vmem:[#allocation2 + $0x1c8] sm:$0xff] %v1774
        %1839 = vst [vmem:[#allocation2 + $0x1d0] sm:$0xff] %v1775
        %1840 = vst [vmem:[#allocation2 + $0x1d8] sm:$0xff] %v1776
        %1841 = vst [vmem:[#allocation2 + $0x1e0] sm:$0xff] %v1777
        %1842 = vst [vmem:[#allocation2 + $0x1e8] sm:$0xff] %v1778
        %1843 = vst [vmem:[#allocation2 + $0x1f0] sm:$0xff] %v1779
        %1844 = vst [vmem:[#allocation2 + $0x1f8] sm:$0xff] %v1780
        %p1845 = scmp.eq.s32.totalorder %s22, 1
        // Predicated region
        $region49: #{tpu_custom_call.1} parent=31 // pred_check
          %p1846 = pneg %p1845
        $region50: #{tpu_custom_call.1} parent=31 // pred_check_branch
          %1848 = sbr.rel (%p1846) target = $region52
        $region51: #{tpu_custom_call.1} parent=31 // pred_region
          %v1849 = vstv %s301
          %v1850 = vrcp.pop %v1849
          %s1851 = vtos %v1850
          %v1852 = vld [vmem:[#allocation2] sm:$0xff]
          %v1853 = vld [vmem:[#allocation2 + $0x8] sm:$0xff]
          %v1854 = vld [vmem:[#allocation2 + $0x10] sm:$0xff]
          %v1855 = vld [vmem:[#allocation2 + $0x18] sm:$0xff]
          %v1856 = vld [vmem:[#allocation2 + $0x20] sm:$0xff]
          %v1857 = vld [vmem:[#allocation2 + $0x28] sm:$0xff]
          %v1858 = vld [vmem:[#allocation2 + $0x30] sm:$0xff]
          %v1859 = vld [vmem:[#allocation2 + $0x38] sm:$0xff]
          %v1860 = vld [vmem:[#allocation2 + $0x40] sm:$0xff]
          %v1861 = vld [vmem:[#allocation2 + $0x48] sm:$0xff]
          %v1862 = vld [vmem:[#allocation2 + $0x50] sm:$0xff]
          %v1863 = vld [vmem:[#allocation2 + $0x58] sm:$0xff]
          %v1864 = vld [vmem:[#allocation2 + $0x60] sm:$0xff]
          %v1865 = vld [vmem:[#allocation2 + $0x68] sm:$0xff]
          %v1866 = vld [vmem:[#allocation2 + $0x70] sm:$0xff]
          %v1867 = vld [vmem:[#allocation2 + $0x78] sm:$0xff]
          %v1868 = vld [vmem:[#allocation2 + $0x80] sm:$0xff]
          %v1869 = vld [vmem:[#allocation2 + $0x88] sm:$0xff]
          %v1870 = vld [vmem:[#allocation2 + $0x90] sm:$0xff]
          %v1871 = vld [vmem:[#allocation2 + $0x98] sm:$0xff]
          %v1872 = vld [vmem:[#allocation2 + $0xa0] sm:$0xff]
          %v1873 = vld [vmem:[#allocation2 + $0xa8] sm:$0xff]
          %v1874 = vld [vmem:[#allocation2 + $0xb0] sm:$0xff]
          %v1875 = vld [vmem:[#allocation2 + $0xb8] sm:$0xff]
          %v1876 = vld [vmem:[#allocation2 + $0xc0] sm:$0xff]
          %v1877 = vld [vmem:[#allocation2 + $0xc8] sm:$0xff]
          %v1878 = vld [vmem:[#allocation2 + $0xd0] sm:$0xff]
          %v1879 = vld [vmem:[#allocation2 + $0xd8] sm:$0xff]
          %v1880 = vld [vmem:[#allocation2 + $0xe0] sm:$0xff]
          %v1881 = vld [vmem:[#allocation2 + $0xe8] sm:$0xff]
          %v1882 = vld [vmem:[#allocation2 + $0xf0] sm:$0xff]
          %v1883 = vld [vmem:[#allocation2 + $0xf8] sm:$0xff]
          %v1884 = vld [vmem:[#allocation2 + $0x100] sm:$0xff]
          %v1885 = vld [vmem:[#allocation2 + $0x108] sm:$0xff]
          %v1886 = vld [vmem:[#allocation2 + $0x110] sm:$0xff]
          %v1887 = vld [vmem:[#allocation2 + $0x118] sm:$0xff]
          %v1888 = vld [vmem:[#allocation2 + $0x120] sm:$0xff]
          %v1889 = vld [vmem:[#allocation2 + $0x128] sm:$0xff]
          %v1890 = vld [vmem:[#allocation2 + $0x130] sm:$0xff]
          %v1891 = vld [vmem:[#allocation2 + $0x138] sm:$0xff]
          %v1892 = vld [vmem:[#allocation2 + $0x140] sm:$0xff]
          %v1893 = vld [vmem:[#allocation2 + $0x148] sm:$0xff]
          %v1894 = vld [vmem:[#allocation2 + $0x150] sm:$0xff]
          %v1895 = vld [vmem:[#allocation2 + $0x158] sm:$0xff]
          %v1896 = vld [vmem:[#allocation2 + $0x160] sm:$0xff]
          %v1897 = vld [vmem:[#allocation2 + $0x168] sm:$0xff]
          %v1898 = vld [vmem:[#allocation2 + $0x170] sm:$0xff]
          %v1899 = vld [vmem:[#allocation2 + $0x178] sm:$0xff]
          %v1900 = vld [vmem:[#allocation2 + $0x180] sm:$0xff]
          %v1901 = vld [vmem:[#allocation2 + $0x188] sm:$0xff]
          %v1902 = vld [vmem:[#allocation2 + $0x190] sm:$0xff]
          %v1903 = vld [vmem:[#allocation2 + $0x198] sm:$0xff]
          %v1904 = vld [vmem:[#allocation2 + $0x1a0] sm:$0xff]
          %v1905 = vld [vmem:[#allocation2 + $0x1a8] sm:$0xff]
          %v1906 = vld [vmem:[#allocation2 + $0x1b0] sm:$0xff]
          %v1907 = vld [vmem:[#allocation2 + $0x1b8] sm:$0xff]
          %v1908 = vld [vmem:[#allocation2 + $0x1c0] sm:$0xff]
          %v1909 = vld [vmem:[#allocation2 + $0x1c8] sm:$0xff]
          %v1910 = vld [vmem:[#allocation2 + $0x1d0] sm:$0xff]
          %v1911 = vld [vmem:[#allocation2 + $0x1d8] sm:$0xff]
          %v1912 = vld [vmem:[#allocation2 + $0x1e0] sm:$0xff]
          %v1913 = vld [vmem:[#allocation2 + $0x1e8] sm:$0xff]
          %v1914 = vld [vmem:[#allocation2 + $0x1f0] sm:$0xff]
          %v1915 = vld [vmem:[#allocation2 + $0x1f8] sm:$0xff]
          %v1916 = vadd.f32 %v1852, %v1853
          %v1917 = vadd.f32 %v1916, %v1854
          %v1918 = vadd.f32 %v1917, %v1855
          %v1919 = vadd.f32 %v1918, %v1856
          %v1920 = vadd.f32 %v1919, %v1857
          %v1921 = vadd.f32 %v1920, %v1858
          %v1922 = vadd.f32 %v1921, %v1859
          %v1923 = vadd.f32 %v1922, %v1860
          %v1924 = vadd.f32 %v1923, %v1861
          %v1925 = vadd.f32 %v1924, %v1862
          %v1926 = vadd.f32 %v1925, %v1863
          %v1927 = vadd.f32 %v1926, %v1864
          %v1928 = vadd.f32 %v1927, %v1865
          %v1929 = vadd.f32 %v1928, %v1866
          %v1930 = vadd.f32 %v1929, %v1867
          %v1931 = vadd.f32 %v1930, %v1868
          %v1932 = vadd.f32 %v1931, %v1869
          %v1933 = vadd.f32 %v1932, %v1870
          %v1934 = vadd.f32 %v1933, %v1871
          %v1935 = vadd.f32 %v1934, %v1872
          %v1936 = vadd.f32 %v1935, %v1873
          %v1937 = vadd.f32 %v1936, %v1874
          %v1938 = vadd.f32 %v1937, %v1875
          %v1939 = vadd.f32 %v1938, %v1876
          %v1940 = vadd.f32 %v1939, %v1877
          %v1941 = vadd.f32 %v1940, %v1878
          %v1942 = vadd.f32 %v1941, %v1879
          %v1943 = vadd.f32 %v1942, %v1880
          %v1944 = vadd.f32 %v1943, %v1881
          %v1945 = vadd.f32 %v1944, %v1882
          %v1946 = vadd.f32 %v1945, %v1883
          %v1947 = vadd.f32 %v1946, %v1884
          %v1948 = vadd.f32 %v1947, %v1885
          %v1949 = vadd.f32 %v1948, %v1886
          %v1950 = vadd.f32 %v1949, %v1887
          %v1951 = vadd.f32 %v1950, %v1888
          %v1952 = vadd.f32 %v1951, %v1889
          %v1953 = vadd.f32 %v1952, %v1890
          %v1954 = vadd.f32 %v1953, %v1891
          %v1955 = vadd.f32 %v1954, %v1892
          %v1956 = vadd.f32 %v1955, %v1893
          %v1957 = vadd.f32 %v1956, %v1894
          %v1958 = vadd.f32 %v1957, %v1895
          %v1959 = vadd.f32 %v1958, %v1896
          %v1960 = vadd.f32 %v1959, %v1897
          %v1961 = vadd.f32 %v1960, %v1898
          %v1962 = vadd.f32 %v1961, %v1899
          %v1963 = vadd.f32 %v1962, %v1900
          %v1964 = vadd.f32 %v1963, %v1901
          %v1965 = vadd.f32 %v1964, %v1902
          %v1966 = vadd.f32 %v1965, %v1903
          %v1967 = vadd.f32 %v1966, %v1904
          %v1968 = vadd.f32 %v1967, %v1905
          %v1969 = vadd.f32 %v1968, %v1906
          %v1970 = vadd.f32 %v1969, %v1907
          %v1971 = vadd.f32 %v1970, %v1908
          %v1972 = vadd.f32 %v1971, %v1909
          %v1973 = vadd.f32 %v1972, %v1910
          %v1974 = vadd.f32 %v1973, %v1911
          %v1975 = vadd.f32 %v1974, %v1912
          %v1976 = vadd.f32 %v1975, %v1913
          %v1977 = vadd.f32 %v1976, %v1914
          %v1978 = vadd.f32 %v1977, %v1915
          %1979 = vadd.xlane.f32.xlu0 %v1978
          %v1980 = vpop.xlane.xlu0 %1979
          %v1981 = vrot.slane %v1980, 4
          %v1982 = vadd.f32 %v1980, %v1981
          %v1983 = vrot.slane %v1982, 2
          %v1984 = vadd.f32 %v1982, %v1983
          %v1985 = vrot.slane %v1984, 1
          %v1986 = vadd.f32 %v1984, %v1985
          %s1987 = vtos %v1986
          %s1988 = smul.f32 %s1987, %s1851
          %s1989 = smul.f32 %s1988, %s1851
          %s1990 = smul.f32 %s1989, 1.4285714e-05
          %s1991 = scalar_lea.smem [#allocation10], 0
          %1992 = sst [smem:[%s1991]] %s1990
        $region52: #{tpu_custom_call.1} parent=31 // pred_fallthru
          _
        // Predicated region
        $region53: #{tpu_custom_call.1} parent=31 // pred_check
          %p1993 = pneg %p108
        $region54: #{tpu_custom_call.1} parent=31 // pred_check_branch
          %1995 = sbr.rel (%p1993) target = $region56
        $region55: #{tpu_custom_call.1} parent=31 // pred_region
          %s1997 = ssub.s32 16, 16
          %1998 = vsyncadd [#allocation6], %s1997
          %2001 = dma.smem_to_hbm [#allocation10], 16, %s3, [#allocation6]
        $region56: #{tpu_custom_call.1} parent=31 // pred_fallthru
          _
        // Predicated region
        $region57: #{tpu_custom_call.1} parent=31 // pred_check
          %p2002 = pneg %p108
        $region58: #{tpu_custom_call.1} parent=31 // pred_check_branch
          %2004 = sbr.rel (%p2002) target = $region60
        $region59: #{tpu_custom_call.1} parent=31 // pred_region
          %2005 = dma.done [#allocation6], 16
        $region60: #{tpu_custom_call.1} parent=31 // pred_fallthru
          _
        %2006 = sfence
      $region32: #{tpu_custom_call.1} parent=5 // pred_fallthru
        _
      %p2007 = scmp.le.s32.totalorder 2, %s17
      // Predicated region
      $region61: #{tpu_custom_call.1} parent=5 // pred_check
        %p2008 = pneg %p2007
      $region62: #{tpu_custom_call.1} parent=5 // pred_check_branch
        %2010 = sbr.rel (%p2008) target = $region64
      $region63: #{tpu_custom_call.1} parent=5 // pred_region
        %s2011 = ssub.s32 %s17, 2
      $region64: #{tpu_custom_call.1} parent=5 // pred_fallthru
        _
    $region6: #{tpu_custom_call.1} parent=1 // loop_footer
      %s21 = sadd.s32 1, %s17
    $region7: #{tpu_custom_call.1} parent=1 // loop_footer_branch
      %16 = sbr.rel target = $region3
    $region8: #{tpu_custom_call.1} parent=1 // loop_exit
      _
    %2012 = vsyncpa [#allocation4], 1
    %s2013 = scalar_lea.sflag [#allocation4], 1
    %2014 = vsyncpa %s2013, 1
    %2015 = vsyncpa [#allocation9], 1
    %s2016 = scalar_lea.sflag [#allocation9], 1
    %2017 = vsyncpa %s2016, 1
    %2018 = vsyncpa [#allocation5], 1
    %s2019 = scalar_lea.sflag [#allocation5], 1
    %2020 = vsyncpa %s2019, 1
    %2021 = vsyncpa [#allocation6], 1
    %s2022 = scalar_lea.sflag [#allocation6], 1
    %2023 = vsyncpa %s2022, 1

</llo_original>
